<compile_context>
chip_gen: v5e
topology: v5e:2x2
jax: 0.10.0
libtpu: 0.0.40
codegen_flags: <defaults>
</compile_context>

<pallas_src>
import jax
import jax.numpy as jnp
from jax import lax
from jax.experimental import pallas as pl
from jax.experimental.pallas import tpu as pltpu

# ---- problem sizes (mirrors the PyTorch module: n -> Conv2d(n//2+1, 2n, (16,1))) ----
N_PARAM = 8                  # "n" after the script's n = n // 2
C_IN = N_PARAM // 2 + 1      # 5
C_OUT = 2 * N_PARAM          # 16
KH = 16                      # kernel height
H = 32                       # input spatial height, W == 1
L_OUT = H - KH + 1           # 17

_SELU_ALPHA = 1.6732632423543772848170429916717
_SELU_SCALE = 1.0507009873554804934193349852946


def _selu(x):
    return _SELU_SCALE * jnp.where(x > 0, x, _SELU_ALPHA * (jnp.exp(x) - 1.0))


def _fused_kernel(xs_ref, w_ref, b_ref, a_ref, gb_ref, y_ref, gy_ref):
    # xs_ref: (3*NB, C_IN, H)   stacked [A items | B items | Y items]
    # w_ref : (KH, C_OUT, C_IN) conv weight, kernel-row major
    # b_ref : (C_OUT, 1)        bias (channel-major column)
    # a_ref : (NB, C_OUT, L_OUT)   gb_ref: (NB, C_OUT, C_OUT)
    # y_ref : (NB, C_OUT, L_OUT)   gy_ref: (NB, C_OUT, C_OUT)
    nb = a_ref.shape[0]
    b = b_ref[...]                                 # (C_OUT, 1), lane-broadcast below
    inv_q = jnp.float32(1.0 / C_OUT)

    def conv_selu(item):
        x = xs_ref[item]                           # (C_IN, H) — one vreg
        acc = jnp.zeros((C_OUT, L_OUT), jnp.float32)
        # in-kernel im2col: conv as a static sum over KH of tiny MXU matmuls,
        # produced directly in channel-major (C_OUT, L_OUT) order.
        for kh in range(KH):
            acc = acc + jnp.dot(w_ref[kh], x[:, kh:kh + L_OUT],
                                preferred_element_type=jnp.float32)
        return _selu(acc + b)                      # (C_OUT, L_OUT)

    def gram(h):
        # g[i, j] = sum_l h[i, l] * h[j, l]; contract over L_OUT without h.T copy.
        g = lax.dot_general(h, h,
                            dimension_numbers=(((1,), (1,)), ((), ())),
                            preferred_element_type=jnp.float32)
        return g * inv_q                           # constant multiply, not divide

    for i in range(nb):                            # A: activation only (gram unused)
        a_ref[i] = conv_selu(i)
    for i in range(nb):                            # B: gram only (b not returned)
        gb_ref[i] = gram(conv_selu(nb + i))
    for i in range(nb):                            # Y: both
        h = conv_selu(2 * nb + i)
        y_ref[i] = h
        gy_ref[i] = gram(h)


def neural_network_forward(A, B, Y, weight, bias):
    """Mirrors NeuralNetwork.forward; returns (a, g_b, y, g_y).

    A, B, Y: (NB, C_IN, H, 1) f32; weight: (C_OUT, C_IN, KH, 1); bias: (C_OUT,).
    a, y: (NB, C_OUT, L_OUT); g_b, g_y: (NB, C_OUT, C_OUT).
    """
    nb = A.shape[0]
    assert B.shape[0] == nb and Y.shape[0] == nb

    xs = jnp.concatenate([A, B, Y], axis=0)[..., 0]            # (3*NB, C_IN, H)
    w3 = weight[..., 0].transpose(2, 0, 1)                     # (KH, C_OUT, C_IN)
    bcol = bias.reshape(C_OUT, 1)                              # (C_OUT, 1)

    a, g_b, y, g_y = pl.pallas_call(
        _fused_kernel,
        out_shape=(
            jax.ShapeDtypeStruct((nb, C_OUT, L_OUT), jnp.float32),
            jax.ShapeDtypeStruct((nb, C_OUT, C_OUT), jnp.float32),
            jax.ShapeDtypeStruct((nb, C_OUT, L_OUT), jnp.float32),
            jax.ShapeDtypeStruct((nb, C_OUT, C_OUT), jnp.float32),
        ),
        grid=(1,),                                             # single grid step
        in_specs=[
            pl.BlockSpec((3 * nb, C_IN, H), lambda i: (0, 0, 0)),
            pl.BlockSpec((KH, C_OUT, C_IN), lambda i: (0, 0, 0)),
            pl.BlockSpec((C_OUT, 1), lambda i: (0, 0)),
        ],
        out_specs=(
            pl.BlockSpec((nb, C_OUT, L_OUT), lambda i: (0, 0, 0)),
            pl.BlockSpec((nb, C_OUT, C_OUT), lambda i: (0, 0, 0)),
            pl.BlockSpec((nb, C_OUT, L_OUT), lambda i: (0, 0, 0)),
            pl.BlockSpec((nb, C_OUT, C_OUT), lambda i: (0, 0, 0)),
        ),
        compiler_params=pltpu.CompilerParams(dimension_semantics=("arbitrary",)),
    )(xs, w3, bcol)

    return a, g_b, y, g_y


def _reference_forward(A, B, Y, weight, bias):
    # Pure-JAX reference of the same math (conv + selu + grams).
    def conv_selu(x):
        xs_ = x[..., 0]                                        # (N, C_IN, H)
        patches = jnp.stack([xs_[:, :, kh:kh + L_OUT] for kh in range(KH)], axis=2)
        out = jnp.einsum('nckl,ock->nol', patches, weight[..., 0]) + bias[None, :, None]
        return _selu(out)

    a = conv_selu(A)
    bact = conv_selu(B)
    y = conv_selu(Y)
    g_b = jnp.einsum('nol,npl->nop', bact, bact) / C_OUT
    g_y = jnp.einsum('nol,npl->nop', y, y) / C_OUT
    return a, g_b, y, g_y


if __name__ == "__main__":
    key = jax.random.PRNGKey(0)
    k_a, k_b, k_y, k_w, k_bias = jax.random.split(key, 5)

    # Deterministic parameter init (matches module shapes):
    #   weight: normal(std=sqrt(2/n)); bias: PyTorch default uniform(+-1/sqrt(fan_in))
    weight = (jnp.sqrt(2.0 / N_PARAM)
              * jax.random.normal(k_w, (C_OUT, C_IN, KH, 1), dtype=jnp.float32))
    bound = 1.0 / jnp.sqrt(jnp.float32(C_IN * KH))
    bias = jax.random.uniform(k_bias, (C_OUT,), dtype=jnp.float32,
                              minval=-bound, maxval=bound)

    # Inputs mirror A[None, :, :, None] -> (1, C_IN, H, 1); Y ~ U[0,1)*0.001
    A = jax.random.normal(k_a, (1, C_IN, H, 1), dtype=jnp.float32)
    B = jax.random.normal(k_b, (1, C_IN, H, 1), dtype=jnp.float32)
    Y = jax.random.uniform(k_y, (1, C_IN, H, 1), dtype=jnp.float32) * 0.001

    a, g_b, y, g_y = jax.block_until_ready(
        jax.jit(neural_network_forward)(A, B, Y, weight, bias))

    assert a.shape == (1, C_OUT, L_OUT)
    assert g_b.shape == (1, C_OUT, C_OUT)
    assert y.shape == (1, C_OUT, L_OUT)
    assert g_y.shape == (1, C_OUT, C_OUT)

    # Cross-check against a pure-JAX reference of the same math.
    a_ref, gb_ref, y_ref, gy_ref = _reference_forward(A, B, Y, weight, bias)
    assert jnp.allclose(a, a_ref, rtol=1e-5, atol=1e-5)
    assert jnp.allclose(g_b, gb_ref, rtol=1e-5, atol=1e-5)
    assert jnp.allclose(y, y_ref, rtol=1e-5, atol=1e-5)
    assert jnp.allclose(g_y, gy_ref, rtol=1e-5, atol=1e-5)

    print("KERNEL_OK")
</pallas_src>

<mosaic_0001>
module attributes {stable_mosaic.version = 11 : i64} {
  func.func @_fused_kernel(%arg0: i32, %arg1: memref<3x5x32xf32, #tpu.memory_space<vmem>>, %arg2: memref<16x16x5xf32, #tpu.memory_space<vmem>>, %arg3: memref<16x1xf32, #tpu.memory_space<vmem>>, %arg4: memref<1x16x17xf32, #tpu.memory_space<vmem>>, %arg5: memref<1x16x16xf32, #tpu.memory_space<vmem>>, %arg6: memref<1x16x17xf32, #tpu.memory_space<vmem>>, %arg7: memref<1x16x16xf32, #tpu.memory_space<vmem>>) attributes {dimension_semantics = [#tpu.dimension_semantics<arbitrary>], iteration_bounds = array<i64: 1>, scalar_prefetch = 0 : i64, scratch_operands = 0 : i64, tpu.core_type = #tpu.core_type<tc>, window_params = [{pipeline_mode = #tpu.pipeline_mode<synchronous>, transform_indices = @transform_0, window_bounds = array<i64: 3, 5, 32>}, {pipeline_mode = #tpu.pipeline_mode<synchronous>, transform_indices = @transform_1, window_bounds = array<i64: 16, 16, 5>}, {pipeline_mode = #tpu.pipeline_mode<synchronous>, transform_indices = @transform_2, window_bounds = array<i64: 16, 1>}, {pipeline_mode = #tpu.pipeline_mode<synchronous>, transform_indices = @transform_3, window_bounds = array<i64: 1, 16, 17>}, {pipeline_mode = #tpu.pipeline_mode<synchronous>, transform_indices = @transform_4, window_bounds = array<i64: 1, 16, 16>}, {pipeline_mode = #tpu.pipeline_mode<synchronous>, transform_indices = @transform_5, window_bounds = array<i64: 1, 16, 17>}, {pipeline_mode = #tpu.pipeline_mode<synchronous>, transform_indices = @transform_6, window_bounds = array<i64: 1, 16, 16>}]} {
    %c0 = arith.constant 0 : index
    %c0_0 = arith.constant 0 : index
    %0 = vector.load %arg3[%c0, %c0_0] : memref<16x1xf32, #tpu.memory_space<vmem>>, vector<16x1xf32>
    %c0_1 = arith.constant 0 : index
    %c0_2 = arith.constant 0 : index
    %c0_3 = arith.constant 0 : index
    %1 = vector.load %arg1[%c0_1, %c0_2, %c0_3] : memref<3x5x32xf32, #tpu.memory_space<vmem>>, vector<1x5x32xf32>
    %2 = vector.shape_cast %1 : vector<1x5x32xf32> to vector<5x32xf32>
    %cst = arith.constant 0.000000e+00 : f32
    %3 = vector.broadcast %cst : f32 to vector<16x17xf32>
    %c0_4 = arith.constant 0 : index
    %c0_5 = arith.constant 0 : index
    %c0_6 = arith.constant 0 : index
    %4 = vector.load %arg2[%c0_4, %c0_5, %c0_6] : memref<16x16x5xf32, #tpu.memory_space<vmem>>, vector<1x16x5xf32>
    %5 = vector.shape_cast %4 : vector<1x16x5xf32> to vector<16x5xf32>
    %6 = vector.extract_strided_slice %2 {offsets = [0, 0], sizes = [5, 17], strides = [1, 1]} : vector<5x32xf32> to vector<5x17xf32>
    %cst_7 = arith.constant dense<0.000000e+00> : vector<16x17xf32>
    %7 = tpu.matmul %5, %6, %cst_7 {dimension_numbers = #tpu.dot_dimension_numbers<[1], [0], [0], [1], [0, 0, 1, 1], [], []>} : vector<16x5xf32>, vector<5x17xf32>, vector<16x17xf32> -> vector<16x17xf32>
    %8 = arith.addf %3, %7 : vector<16x17xf32>
    %c1 = arith.constant 1 : index
    %c0_8 = arith.constant 0 : index
    %c0_9 = arith.constant 0 : index
    %9 = vector.load %arg2[%c1, %c0_8, %c0_9] : memref<16x16x5xf32, #tpu.memory_space<vmem>>, vector<1x16x5xf32>
    %10 = vector.shape_cast %9 : vector<1x16x5xf32> to vector<16x5xf32>
    %11 = vector.extract_strided_slice %2 {offsets = [0, 1], sizes = [5, 17], strides = [1, 1]} : vector<5x32xf32> to vector<5x17xf32>
    %cst_10 = arith.constant dense<0.000000e+00> : vector<16x17xf32>
    %12 = tpu.matmul %10, %11, %cst_10 {dimension_numbers = #tpu.dot_dimension_numbers<[1], [0], [0], [1], [0, 0, 1, 1], [], []>} : vector<16x5xf32>, vector<5x17xf32>, vector<16x17xf32> -> vector<16x17xf32>
    %13 = arith.addf %8, %12 : vector<16x17xf32>
    %c2 = arith.constant 2 : index
    %c0_11 = arith.constant 0 : index
    %c0_12 = arith.constant 0 : index
    %14 = vector.load %arg2[%c2, %c0_11, %c0_12] : memref<16x16x5xf32, #tpu.memory_space<vmem>>, vector<1x16x5xf32>
    %15 = vector.shape_cast %14 : vector<1x16x5xf32> to vector<16x5xf32>
    %16 = vector.extract_strided_slice %2 {offsets = [0, 2], sizes = [5, 17], strides = [1, 1]} : vector<5x32xf32> to vector<5x17xf32>
    %cst_13 = arith.constant dense<0.000000e+00> : vector<16x17xf32>
    %17 = tpu.matmul %15, %16, %cst_13 {dimension_numbers = #tpu.dot_dimension_numbers<[1], [0], [0], [1], [0, 0, 1, 1], [], []>} : vector<16x5xf32>, vector<5x17xf32>, vector<16x17xf32> -> vector<16x17xf32>
    %18 = arith.addf %13, %17 : vector<16x17xf32>
    %c3 = arith.constant 3 : index
    %c0_14 = arith.constant 0 : index
    %c0_15 = arith.constant 0 : index
    %19 = vector.load %arg2[%c3, %c0_14, %c0_15] : memref<16x16x5xf32, #tpu.memory_space<vmem>>, vector<1x16x5xf32>
    %20 = vector.shape_cast %19 : vector<1x16x5xf32> to vector<16x5xf32>
    %21 = vector.extract_strided_slice %2 {offsets = [0, 3], sizes = [5, 17], strides = [1, 1]} : vector<5x32xf32> to vector<5x17xf32>
    %cst_16 = arith.constant dense<0.000000e+00> : vector<16x17xf32>
    %22 = tpu.matmul %20, %21, %cst_16 {dimension_numbers = #tpu.dot_dimension_numbers<[1], [0], [0], [1], [0, 0, 1, 1], [], []>} : vector<16x5xf32>, vector<5x17xf32>, vector<16x17xf32> -> vector<16x17xf32>
    %23 = arith.addf %18, %22 : vector<16x17xf32>
    %c4 = arith.constant 4 : index
    %c0_17 = arith.constant 0 : index
    %c0_18 = arith.constant 0 : index
    %24 = vector.load %arg2[%c4, %c0_17, %c0_18] : memref<16x16x5xf32, #tpu.memory_space<vmem>>, vector<1x16x5xf32>
    %25 = vector.shape_cast %24 : vector<1x16x5xf32> to vector<16x5xf32>
    %26 = vector.extract_strided_slice %2 {offsets = [0, 4], sizes = [5, 17], strides = [1, 1]} : vector<5x32xf32> to vector<5x17xf32>
    %cst_19 = arith.constant dense<0.000000e+00> : vector<16x17xf32>
    %27 = tpu.matmul %25, %26, %cst_19 {dimension_numbers = #tpu.dot_dimension_numbers<[1], [0], [0], [1], [0, 0, 1, 1], [], []>} : vector<16x5xf32>, vector<5x17xf32>, vector<16x17xf32> -> vector<16x17xf32>
    %28 = arith.addf %23, %27 : vector<16x17xf32>
    %c5 = arith.constant 5 : index
    %c0_20 = arith.constant 0 : index
    %c0_21 = arith.constant 0 : index
    %29 = vector.load %arg2[%c5, %c0_20, %c0_21] : memref<16x16x5xf32, #tpu.memory_space<vmem>>, vector<1x16x5xf32>
    %30 = vector.shape_cast %29 : vector<1x16x5xf32> to vector<16x5xf32>
    %31 = vector.extract_strided_slice %2 {offsets = [0, 5], sizes = [5, 17], strides = [1, 1]} : vector<5x32xf32> to vector<5x17xf32>
    %cst_22 = arith.constant dense<0.000000e+00> : vector<16x17xf32>
    %32 = tpu.matmul %30, %31, %cst_22 {dimension_numbers = #tpu.dot_dimension_numbers<[1], [0], [0], [1], [0, 0, 1, 1], [], []>} : vector<16x5xf32>, vector<5x17xf32>, vector<16x17xf32> -> vector<16x17xf32>
    %33 = arith.addf %28, %32 : vector<16x17xf32>
    %c6 = arith.constant 6 : index
    %c0_23 = arith.constant 0 : index
    %c0_24 = arith.constant 0 : index
    %34 = vector.load %arg2[%c6, %c0_23, %c0_24] : memref<16x16x5xf32, #tpu.memory_space<vmem>>, vector<1x16x5xf32>
    %35 = vector.shape_cast %34 : vector<1x16x5xf32> to vector<16x5xf32>
    %36 = vector.extract_strided_slice %2 {offsets = [0, 6], sizes = [5, 17], strides = [1, 1]} : vector<5x32xf32> to vector<5x17xf32>
    %cst_25 = arith.constant dense<0.000000e+00> : vector<16x17xf32>
    %37 = tpu.matmul %35, %36, %cst_25 {dimension_numbers = #tpu.dot_dimension_numbers<[1], [0], [0], [1], [0, 0, 1, 1], [], []>} : vector<16x5xf32>, vector<5x17xf32>, vector<16x17xf32> -> vector<16x17xf32>
    %38 = arith.addf %33, %37 : vector<16x17xf32>
    %c7 = arith.constant 7 : index
    %c0_26 = arith.constant 0 : index
    %c0_27 = arith.constant 0 : index
    %39 = vector.load %arg2[%c7, %c0_26, %c0_27] : memref<16x16x5xf32, #tpu.memory_space<vmem>>, vector<1x16x5xf32>
    %40 = vector.shape_cast %39 : vector<1x16x5xf32> to vector<16x5xf32>
    %41 = vector.extract_strided_slice %2 {offsets = [0, 7], sizes = [5, 17], strides = [1, 1]} : vector<5x32xf32> to vector<5x17xf32>
    %cst_28 = arith.constant dense<0.000000e+00> : vector<16x17xf32>
    %42 = tpu.matmul %40, %41, %cst_28 {dimension_numbers = #tpu.dot_dimension_numbers<[1], [0], [0], [1], [0, 0, 1, 1], [], []>} : vector<16x5xf32>, vector<5x17xf32>, vector<16x17xf32> -> vector<16x17xf32>
    %43 = arith.addf %38, %42 : vector<16x17xf32>
    %c8 = arith.constant 8 : index
    %c0_29 = arith.constant 0 : index
    %c0_30 = arith.constant 0 : index
    %44 = vector.load %arg2[%c8, %c0_29, %c0_30] : memref<16x16x5xf32, #tpu.memory_space<vmem>>, vector<1x16x5xf32>
    %45 = vector.shape_cast %44 : vector<1x16x5xf32> to vector<16x5xf32>
    %46 = vector.extract_strided_slice %2 {offsets = [0, 8], sizes = [5, 17], strides = [1, 1]} : vector<5x32xf32> to vector<5x17xf32>
    %cst_31 = arith.constant dense<0.000000e+00> : vector<16x17xf32>
    %47 = tpu.matmul %45, %46, %cst_31 {dimension_numbers = #tpu.dot_dimension_numbers<[1], [0], [0], [1], [0, 0, 1, 1], [], []>} : vector<16x5xf32>, vector<5x17xf32>, vector<16x17xf32> -> vector<16x17xf32>
    %48 = arith.addf %43, %47 : vector<16x17xf32>
    %c9 = arith.constant 9 : index
    %c0_32 = arith.constant 0 : index
    %c0_33 = arith.constant 0 : index
    %49 = vector.load %arg2[%c9, %c0_32, %c0_33] : memref<16x16x5xf32, #tpu.memory_space<vmem>>, vector<1x16x5xf32>
    %50 = vector.shape_cast %49 : vector<1x16x5xf32> to vector<16x5xf32>
    %51 = vector.extract_strided_slice %2 {offsets = [0, 9], sizes = [5, 17], strides = [1, 1]} : vector<5x32xf32> to vector<5x17xf32>
    %cst_34 = arith.constant dense<0.000000e+00> : vector<16x17xf32>
    %52 = tpu.matmul %50, %51, %cst_34 {dimension_numbers = #tpu.dot_dimension_numbers<[1], [0], [0], [1], [0, 0, 1, 1], [], []>} : vector<16x5xf32>, vector<5x17xf32>, vector<16x17xf32> -> vector<16x17xf32>
    %53 = arith.addf %48, %52 : vector<16x17xf32>
    %c10 = arith.constant 10 : index
    %c0_35 = arith.constant 0 : index
    %c0_36 = arith.constant 0 : index
    %54 = vector.load %arg2[%c10, %c0_35, %c0_36] : memref<16x16x5xf32, #tpu.memory_space<vmem>>, vector<1x16x5xf32>
    %55 = vector.shape_cast %54 : vector<1x16x5xf32> to vector<16x5xf32>
    %56 = vector.extract_strided_slice %2 {offsets = [0, 10], sizes = [5, 17], strides = [1, 1]} : vector<5x32xf32> to vector<5x17xf32>
    %cst_37 = arith.constant dense<0.000000e+00> : vector<16x17xf32>
    %57 = tpu.matmul %55, %56, %cst_37 {dimension_numbers = #tpu.dot_dimension_numbers<[1], [0], [0], [1], [0, 0, 1, 1], [], []>} : vector<16x5xf32>, vector<5x17xf32>, vector<16x17xf32> -> vector<16x17xf32>
    %58 = arith.addf %53, %57 : vector<16x17xf32>
    %c11 = arith.constant 11 : index
    %c0_38 = arith.constant 0 : index
    %c0_39 = arith.constant 0 : index
    %59 = vector.load %arg2[%c11, %c0_38, %c0_39] : memref<16x16x5xf32, #tpu.memory_space<vmem>>, vector<1x16x5xf32>
    %60 = vector.shape_cast %59 : vector<1x16x5xf32> to vector<16x5xf32>
    %61 = vector.extract_strided_slice %2 {offsets = [0, 11], sizes = [5, 17], strides = [1, 1]} : vector<5x32xf32> to vector<5x17xf32>
    %cst_40 = arith.constant dense<0.000000e+00> : vector<16x17xf32>
    %62 = tpu.matmul %60, %61, %cst_40 {dimension_numbers = #tpu.dot_dimension_numbers<[1], [0], [0], [1], [0, 0, 1, 1], [], []>} : vector<16x5xf32>, vector<5x17xf32>, vector<16x17xf32> -> vector<16x17xf32>
    %63 = arith.addf %58, %62 : vector<16x17xf32>
    %c12 = arith.constant 12 : index
    %c0_41 = arith.constant 0 : index
    %c0_42 = arith.constant 0 : index
    %64 = vector.load %arg2[%c12, %c0_41, %c0_42] : memref<16x16x5xf32, #tpu.memory_space<vmem>>, vector<1x16x5xf32>
    %65 = vector.shape_cast %64 : vector<1x16x5xf32> to vector<16x5xf32>
    %66 = vector.extract_strided_slice %2 {offsets = [0, 12], sizes = [5, 17], strides = [1, 1]} : vector<5x32xf32> to vector<5x17xf32>
    %cst_43 = arith.constant dense<0.000000e+00> : vector<16x17xf32>
    %67 = tpu.matmul %65, %66, %cst_43 {dimension_numbers = #tpu.dot_dimension_numbers<[1], [0], [0], [1], [0, 0, 1, 1], [], []>} : vector<16x5xf32>, vector<5x17xf32>, vector<16x17xf32> -> vector<16x17xf32>
    %68 = arith.addf %63, %67 : vector<16x17xf32>
    %c13 = arith.constant 13 : index
    %c0_44 = arith.constant 0 : index
    %c0_45 = arith.constant 0 : index
    %69 = vector.load %arg2[%c13, %c0_44, %c0_45] : memref<16x16x5xf32, #tpu.memory_space<vmem>>, vector<1x16x5xf32>
    %70 = vector.shape_cast %69 : vector<1x16x5xf32> to vector<16x5xf32>
    %71 = vector.extract_strided_slice %2 {offsets = [0, 13], sizes = [5, 17], strides = [1, 1]} : vector<5x32xf32> to vector<5x17xf32>
    %cst_46 = arith.constant dense<0.000000e+00> : vector<16x17xf32>
    %72 = tpu.matmul %70, %71, %cst_46 {dimension_numbers = #tpu.dot_dimension_numbers<[1], [0], [0], [1], [0, 0, 1, 1], [], []>} : vector<16x5xf32>, vector<5x17xf32>, vector<16x17xf32> -> vector<16x17xf32>
    %73 = arith.addf %68, %72 : vector<16x17xf32>
    %c14 = arith.constant 14 : index
    %c0_47 = arith.constant 0 : index
    %c0_48 = arith.constant 0 : index
    %74 = vector.load %arg2[%c14, %c0_47, %c0_48] : memref<16x16x5xf32, #tpu.memory_space<vmem>>, vector<1x16x5xf32>
    %75 = vector.shape_cast %74 : vector<1x16x5xf32> to vector<16x5xf32>
    %76 = vector.extract_strided_slice %2 {offsets = [0, 14], sizes = [5, 17], strides = [1, 1]} : vector<5x32xf32> to vector<5x17xf32>
    %cst_49 = arith.constant dense<0.000000e+00> : vector<16x17xf32>
    %77 = tpu.matmul %75, %76, %cst_49 {dimension_numbers = #tpu.dot_dimension_numbers<[1], [0], [0], [1], [0, 0, 1, 1], [], []>} : vector<16x5xf32>, vector<5x17xf32>, vector<16x17xf32> -> vector<16x17xf32>
    %78 = arith.addf %73, %77 : vector<16x17xf32>
    %c15 = arith.constant 15 : index
    %c0_50 = arith.constant 0 : index
    %c0_51 = arith.constant 0 : index
    %79 = vector.load %arg2[%c15, %c0_50, %c0_51] : memref<16x16x5xf32, #tpu.memory_space<vmem>>, vector<1x16x5xf32>
    %80 = vector.shape_cast %79 : vector<1x16x5xf32> to vector<16x5xf32>
    %81 = vector.extract_strided_slice %2 {offsets = [0, 15], sizes = [5, 17], strides = [1, 1]} : vector<5x32xf32> to vector<5x17xf32>
    %cst_52 = arith.constant dense<0.000000e+00> : vector<16x17xf32>
    %82 = tpu.matmul %80, %81, %cst_52 {dimension_numbers = #tpu.dot_dimension_numbers<[1], [0], [0], [1], [0, 0, 1, 1], [], []>} : vector<16x5xf32>, vector<5x17xf32>, vector<16x17xf32> -> vector<16x17xf32>
    %83 = arith.addf %78, %82 : vector<16x17xf32>
    %84 = vector.broadcast %0 : vector<16x1xf32> to vector<16x17xf32>
    %85 = arith.addf %83, %84 : vector<16x17xf32>
    %cst_53 = arith.constant 0.000000e+00 : f32
    %86 = vector.broadcast %cst_53 : f32 to vector<16x17xf32>
    %87 = arith.cmpf ogt, %85, %86 : vector<16x17xf32>
    %88 = math.exp %85 : vector<16x17xf32>
    %cst_54 = arith.constant 1.000000e+00 : f32
    %89 = vector.broadcast %cst_54 : f32 to vector<16x17xf32>
    %90 = arith.subf %88, %89 : vector<16x17xf32>
    %cst_55 = arith.constant 1.67326319 : f32
    %91 = vector.broadcast %cst_55 : f32 to vector<16x17xf32>
    %92 = arith.mulf %91, %90 : vector<16x17xf32>
    %93 = arith.select %87, %85, %92 : vector<16x17xi1>, vector<16x17xf32>
    %cst_56 = arith.constant 1.05070102 : f32
    %94 = vector.broadcast %cst_56 : f32 to vector<16x17xf32>
    %95 = arith.mulf %94, %93 : vector<16x17xf32>
    %c0_57 = arith.constant 0 : index
    %c0_58 = arith.constant 0 : index
    %c0_59 = arith.constant 0 : index
    %96 = vector.load %arg4[%c0_57, %c0_58, %c0_59] : memref<1x16x17xf32, #tpu.memory_space<vmem>>, vector<1x16x17xf32>
    %97 = vector.shape_cast %96 : vector<1x16x17xf32> to vector<16x17xf32>
    %98 = vector.shape_cast %95 : vector<16x17xf32> to vector<1x16x17xf32>
    tpu.vector_store %arg4[%c0_57, %c0_58, %c0_59], %98 {strides = array<i32>} : memref<1x16x17xf32, #tpu.memory_space<vmem>>, vector<1x16x17xf32>,
    %c1_60 = arith.constant 1 : index
    %c0_61 = arith.constant 0 : index
    %c0_62 = arith.constant 0 : index
    %99 = vector.load %arg1[%c1_60, %c0_61, %c0_62] : memref<3x5x32xf32, #tpu.memory_space<vmem>>, vector<1x5x32xf32>
    %100 = vector.shape_cast %99 : vector<1x5x32xf32> to vector<5x32xf32>
    %cst_63 = arith.constant 0.000000e+00 : f32
    %101 = vector.broadcast %cst_63 : f32 to vector<16x17xf32>
    %c0_64 = arith.constant 0 : index
    %c0_65 = arith.constant 0 : index
    %c0_66 = arith.constant 0 : index
    %102 = vector.load %arg2[%c0_64, %c0_65, %c0_66] : memref<16x16x5xf32, #tpu.memory_space<vmem>>, vector<1x16x5xf32>
    %103 = vector.shape_cast %102 : vector<1x16x5xf32> to vector<16x5xf32>
    %104 = vector.extract_strided_slice %100 {offsets = [0, 0], sizes = [5, 17], strides = [1, 1]} : vector<5x32xf32> to vector<5x17xf32>
    %cst_67 = arith.constant dense<0.000000e+00> : vector<16x17xf32>
    %105 = tpu.matmul %103, %104, %cst_67 {dimension_numbers = #tpu.dot_dimension_numbers<[1], [0], [0], [1], [0, 0, 1, 1], [], []>} : vector<16x5xf32>, vector<5x17xf32>, vector<16x17xf32> -> vector<16x17xf32>
    %106 = arith.addf %101, %105 : vector<16x17xf32>
    %c1_68 = arith.constant 1 : index
    %c0_69 = arith.constant 0 : index
    %c0_70 = arith.constant 0 : index
    %107 = vector.load %arg2[%c1_68, %c0_69, %c0_70] : memref<16x16x5xf32, #tpu.memory_space<vmem>>, vector<1x16x5xf32>
    %108 = vector.shape_cast %107 : vector<1x16x5xf32> to vector<16x5xf32>
    %109 = vector.extract_strided_slice %100 {offsets = [0, 1], sizes = [5, 17], strides = [1, 1]} : vector<5x32xf32> to vector<5x17xf32>
    %cst_71 = arith.constant dense<0.000000e+00> : vector<16x17xf32>
    %110 = tpu.matmul %108, %109, %cst_71 {dimension_numbers = #tpu.dot_dimension_numbers<[1], [0], [0], [1], [0, 0, 1, 1], [], []>} : vector<16x5xf32>, vector<5x17xf32>, vector<16x17xf32> -> vector<16x17xf32>
    %111 = arith.addf %106, %110 : vector<16x17xf32>
    %c2_72 = arith.constant 2 : index
    %c0_73 = arith.constant 0 : index
    %c0_74 = arith.constant 0 : index
    %112 = vector.load %arg2[%c2_72, %c0_73, %c0_74] : memref<16x16x5xf32, #tpu.memory_space<vmem>>, vector<1x16x5xf32>
    %113 = vector.shape_cast %112 : vector<1x16x5xf32> to vector<16x5xf32>
    %114 = vector.extract_strided_slice %100 {offsets = [0, 2], sizes = [5, 17], strides = [1, 1]} : vector<5x32xf32> to vector<5x17xf32>
    %cst_75 = arith.constant dense<0.000000e+00> : vector<16x17xf32>
    %115 = tpu.matmul %113, %114, %cst_75 {dimension_numbers = #tpu.dot_dimension_numbers<[1], [0], [0], [1], [0, 0, 1, 1], [], []>} : vector<16x5xf32>, vector<5x17xf32>, vector<16x17xf32> -> vector<16x17xf32>
    %116 = arith.addf %111, %115 : vector<16x17xf32>
    %c3_76 = arith.constant 3 : index
    %c0_77 = arith.constant 0 : index
    %c0_78 = arith.constant 0 : index
    %117 = vector.load %arg2[%c3_76, %c0_77, %c0_78] : memref<16x16x5xf32, #tpu.memory_space<vmem>>, vector<1x16x5xf32>
    %118 = vector.shape_cast %117 : vector<1x16x5xf32> to vector<16x5xf32>
    %119 = vector.extract_strided_slice %100 {offsets = [0, 3], sizes = [5, 17], strides = [1, 1]} : vector<5x32xf32> to vector<5x17xf32>
    %cst_79 = arith.constant dense<0.000000e+00> : vector<16x17xf32>
    %120 = tpu.matmul %118, %119, %cst_79 {dimension_numbers = #tpu.dot_dimension_numbers<[1], [0], [0], [1], [0, 0, 1, 1], [], []>} : vector<16x5xf32>, vector<5x17xf32>, vector<16x17xf32> -> vector<16x17xf32>
    %121 = arith.addf %116, %120 : vector<16x17xf32>
    %c4_80 = arith.constant 4 : index
    %c0_81 = arith.constant 0 : index
    %c0_82 = arith.constant 0 : index
    %122 = vector.load %arg2[%c4_80, %c0_81, %c0_82] : memref<16x16x5xf32, #tpu.memory_space<vmem>>, vector<1x16x5xf32>
    %123 = vector.shape_cast %122 : vector<1x16x5xf32> to vector<16x5xf32>
    %124 = vector.extract_strided_slice %100 {offsets = [0, 4], sizes = [5, 17], strides = [1, 1]} : vector<5x32xf32> to vector<5x17xf32>
    %cst_83 = arith.constant dense<0.000000e+00> : vector<16x17xf32>
    %125 = tpu.matmul %123, %124, %cst_83 {dimension_numbers = #tpu.dot_dimension_numbers<[1], [0], [0], [1], [0, 0, 1, 1], [], []>} : vector<16x5xf32>, vector<5x17xf32>, vector<16x17xf32> -> vector<16x17xf32>
    %126 = arith.addf %121, %125 : vector<16x17xf32>
    %c5_84 = arith.constant 5 : index
    %c0_85 = arith.constant 0 : index
    %c0_86 = arith.constant 0 : index
    %127 = vector.load %arg2[%c5_84, %c0_85, %c0_86] : memref<16x16x5xf32, #tpu.memory_space<vmem>>, vector<1x16x5xf32>
    %128 = vector.shape_cast %127 : vector<1x16x5xf32> to vector<16x5xf32>
    %129 = vector.extract_strided_slice %100 {offsets = [0, 5], sizes = [5, 17], strides = [1, 1]} : vector<5x32xf32> to vector<5x17xf32>
    %cst_87 = arith.constant dense<0.000000e+00> : vector<16x17xf32>
    %130 = tpu.matmul %128, %129, %cst_87 {dimension_numbers = #tpu.dot_dimension_numbers<[1], [0], [0], [1], [0, 0, 1, 1], [], []>} : vector<16x5xf32>, vector<5x17xf32>, vector<16x17xf32> -> vector<16x17xf32>
    %131 = arith.addf %126, %130 : vector<16x17xf32>
    %c6_88 = arith.constant 6 : index
    %c0_89 = arith.constant 0 : index
    %c0_90 = arith.constant 0 : index
    %132 = vector.load %arg2[%c6_88, %c0_89, %c0_90] : memref<16x16x5xf32, #tpu.memory_space<vmem>>, vector<1x16x5xf32>
    %133 = vector.shape_cast %132 : vector<1x16x5xf32> to vector<16x5xf32>
    %134 = vector.extract_strided_slice %100 {offsets = [0, 6], sizes = [5, 17], strides = [1, 1]} : vector<5x32xf32> to vector<5x17xf32>
    %cst_91 = arith.constant dense<0.000000e+00> : vector<16x17xf32>
    %135 = tpu.matmul %133, %134, %cst_91 {dimension_numbers = #tpu.dot_dimension_numbers<[1], [0], [0], [1], [0, 0, 1, 1], [], []>} : vector<16x5xf32>, vector<5x17xf32>, vector<16x17xf32> -> vector<16x17xf32>
    %136 = arith.addf %131, %135 : vector<16x17xf32>
    %c7_92 = arith.constant 7 : index
    %c0_93 = arith.constant 0 : index
    %c0_94 = arith.constant 0 : index
    %137 = vector.load %arg2[%c7_92, %c0_93, %c0_94] : memref<16x16x5xf32, #tpu.memory_space<vmem>>, vector<1x16x5xf32>
    %138 = vector.shape_cast %137 : vector<1x16x5xf32> to vector<16x5xf32>
    %139 = vector.extract_strided_slice %100 {offsets = [0, 7], sizes = [5, 17], strides = [1, 1]} : vector<5x32xf32> to vector<5x17xf32>
    %cst_95 = arith.constant dense<0.000000e+00> : vector<16x17xf32>
    %140 = tpu.matmul %138, %139, %cst_95 {dimension_numbers = #tpu.dot_dimension_numbers<[1], [0], [0], [1], [0, 0, 1, 1], [], []>} : vector<16x5xf32>, vector<5x17xf32>, vector<16x17xf32> -> vector<16x17xf32>
    %141 = arith.addf %136, %140 : vector<16x17xf32>
    %c8_96 = arith.constant 8 : index
    %c0_97 = arith.constant 0 : index
    %c0_98 = arith.constant 0 : index
    %142 = vector.load %arg2[%c8_96, %c0_97, %c0_98] : memref<16x16x5xf32, #tpu.memory_space<vmem>>, vector<1x16x5xf32>
    %143 = vector.shape_cast %142 : vector<1x16x5xf32> to vector<16x5xf32>
    %144 = vector.extract_strided_slice %100 {offsets = [0, 8], sizes = [5, 17], strides = [1, 1]} : vector<5x32xf32> to vector<5x17xf32>
    %cst_99 = arith.constant dense<0.000000e+00> : vector<16x17xf32>
    %145 = tpu.matmul %143, %144, %cst_99 {dimension_numbers = #tpu.dot_dimension_numbers<[1], [0], [0], [1], [0, 0, 1, 1], [], []>} : vector<16x5xf32>, vector<5x17xf32>, vector<16x17xf32> -> vector<16x17xf32>
    %146 = arith.addf %141, %145 : vector<16x17xf32>
    %c9_100 = arith.constant 9 : index
    %c0_101 = arith.constant 0 : index
    %c0_102 = arith.constant 0 : index
    %147 = vector.load %arg2[%c9_100, %c0_101, %c0_102] : memref<16x16x5xf32, #tpu.memory_space<vmem>>, vector<1x16x5xf32>
    %148 = vector.shape_cast %147 : vector<1x16x5xf32> to vector<16x5xf32>
    %149 = vector.extract_strided_slice %100 {offsets = [0, 9], sizes = [5, 17], strides = [1, 1]} : vector<5x32xf32> to vector<5x17xf32>
    %cst_103 = arith.constant dense<0.000000e+00> : vector<16x17xf32>
    %150 = tpu.matmul %148, %149, %cst_103 {dimension_numbers = #tpu.dot_dimension_numbers<[1], [0], [0], [1], [0, 0, 1, 1], [], []>} : vector<16x5xf32>, vector<5x17xf32>, vector<16x17xf32> -> vector<16x17xf32>
    %151 = arith.addf %146, %150 : vector<16x17xf32>
    %c10_104 = arith.constant 10 : index
    %c0_105 = arith.constant 0 : index
    %c0_106 = arith.constant 0 : index
    %152 = vector.load %arg2[%c10_104, %c0_105, %c0_106] : memref<16x16x5xf32, #tpu.memory_space<vmem>>, vector<1x16x5xf32>
    %153 = vector.shape_cast %152 : vector<1x16x5xf32> to vector<16x5xf32>
    %154 = vector.extract_strided_slice %100 {offsets = [0, 10], sizes = [5, 17], strides = [1, 1]} : vector<5x32xf32> to vector<5x17xf32>
    %cst_107 = arith.constant dense<0.000000e+00> : vector<16x17xf32>
    %155 = tpu.matmul %153, %154, %cst_107 {dimension_numbers = #tpu.dot_dimension_numbers<[1], [0], [0], [1], [0, 0, 1, 1], [], []>} : vector<16x5xf32>, vector<5x17xf32>, vector<16x17xf32> -> vector<16x17xf32>
    %156 = arith.addf %151, %155 : vector<16x17xf32>
    %c11_108 = arith.constant 11 : index
    %c0_109 = arith.constant 0 : index
    %c0_110 = arith.constant 0 : index
    %157 = vector.load %arg2[%c11_108, %c0_109, %c0_110] : memref<16x16x5xf32, #tpu.memory_space<vmem>>, vector<1x16x5xf32>
    %158 = vector.shape_cast %157 : vector<1x16x5xf32> to vector<16x5xf32>
    %159 = vector.extract_strided_slice %100 {offsets = [0, 11], sizes = [5, 17], strides = [1, 1]} : vector<5x32xf32> to vector<5x17xf32>
    %cst_111 = arith.constant dense<0.000000e+00> : vector<16x17xf32>
    %160 = tpu.matmul %158, %159, %cst_111 {dimension_numbers = #tpu.dot_dimension_numbers<[1], [0], [0], [1], [0, 0, 1, 1], [], []>} : vector<16x5xf32>, vector<5x17xf32>, vector<16x17xf32> -> vector<16x17xf32>
    %161 = arith.addf %156, %160 : vector<16x17xf32>
    %c12_112 = arith.constant 12 : index
    %c0_113 = arith.constant 0 : index
    %c0_114 = arith.constant 0 : index
    %162 = vector.load %arg2[%c12_112, %c0_113, %c0_114] : memref<16x16x5xf32, #tpu.memory_space<vmem>>, vector<1x16x5xf32>
    %163 = vector.shape_cast %162 : vector<1x16x5xf32> to vector<16x5xf32>
    %164 = vector.extract_strided_slice %100 {offsets = [0, 12], sizes = [5, 17], strides = [1, 1]} : vector<5x32xf32> to vector<5x17xf32>
    %cst_115 = arith.constant dense<0.000000e+00> : vector<16x17xf32>
    %165 = tpu.matmul %163, %164, %cst_115 {dimension_numbers = #tpu.dot_dimension_numbers<[1], [0], [0], [1], [0, 0, 1, 1], [], []>} : vector<16x5xf32>, vector<5x17xf32>, vector<16x17xf32> -> vector<16x17xf32>
    %166 = arith.addf %161, %165 : vector<16x17xf32>
    %c13_116 = arith.constant 13 : index
    %c0_117 = arith.constant 0 : index
    %c0_118 = arith.constant 0 : index
    %167 = vector.load %arg2[%c13_116, %c0_117, %c0_118] : memref<16x16x5xf32, #tpu.memory_space<vmem>>, vector<1x16x5xf32>
    %168 = vector.shape_cast %167 : vector<1x16x5xf32> to vector<16x5xf32>
    %169 = vector.extract_strided_slice %100 {offsets = [0, 13], sizes = [5, 17], strides = [1, 1]} : vector<5x32xf32> to vector<5x17xf32>
    %cst_119 = arith.constant dense<0.000000e+00> : vector<16x17xf32>
    %170 = tpu.matmul %168, %169, %cst_119 {dimension_numbers = #tpu.dot_dimension_numbers<[1], [0], [0], [1], [0, 0, 1, 1], [], []>} : vector<16x5xf32>, vector<5x17xf32>, vector<16x17xf32> -> vector<16x17xf32>
    %171 = arith.addf %166, %170 : vector<16x17xf32>
    %c14_120 = arith.constant 14 : index
    %c0_121 = arith.constant 0 : index
    %c0_122 = arith.constant 0 : index
    %172 = vector.load %arg2[%c14_120, %c0_121, %c0_122] : memref<16x16x5xf32, #tpu.memory_space<vmem>>, vector<1x16x5xf32>
    %173 = vector.shape_cast %172 : vector<1x16x5xf32> to vector<16x5xf32>
    %174 = vector.extract_strided_slice %100 {offsets = [0, 14], sizes = [5, 17], strides = [1, 1]} : vector<5x32xf32> to vector<5x17xf32>
    %cst_123 = arith.constant dense<0.000000e+00> : vector<16x17xf32>
    %175 = tpu.matmul %173, %174, %cst_123 {dimension_numbers = #tpu.dot_dimension_numbers<[1], [0], [0], [1], [0, 0, 1, 1], [], []>} : vector<16x5xf32>, vector<5x17xf32>, vector<16x17xf32> -> vector<16x17xf32>
    %176 = arith.addf %171, %175 : vector<16x17xf32>
    %c15_124 = arith.constant 15 : index
    %c0_125 = arith.constant 0 : index
    %c0_126 = arith.constant 0 : index
    %177 = vector.load %arg2[%c15_124, %c0_125, %c0_126] : memref<16x16x5xf32, #tpu.memory_space<vmem>>, vector<1x16x5xf32>
    %178 = vector.shape_cast %177 : vector<1x16x5xf32> to vector<16x5xf32>
    %179 = vector.extract_strided_slice %100 {offsets = [0, 15], sizes = [5, 17], strides = [1, 1]} : vector<5x32xf32> to vector<5x17xf32>
    %cst_127 = arith.constant dense<0.000000e+00> : vector<16x17xf32>
    %180 = tpu.matmul %178, %179, %cst_127 {dimension_numbers = #tpu.dot_dimension_numbers<[1], [0], [0], [1], [0, 0, 1, 1], [], []>} : vector<16x5xf32>, vector<5x17xf32>, vector<16x17xf32> -> vector<16x17xf32>
    %181 = arith.addf %176, %180 : vector<16x17xf32>
    %182 = vector.broadcast %0 : vector<16x1xf32> to vector<16x17xf32>
    %183 = arith.addf %181, %182 : vector<16x17xf32>
    %cst_128 = arith.constant 0.000000e+00 : f32
    %184 = vector.broadcast %cst_128 : f32 to vector<16x17xf32>
    %185 = arith.cmpf ogt, %183, %184 : vector<16x17xf32>
    %186 = math.exp %183 : vector<16x17xf32>
    %cst_129 = arith.constant 1.000000e+00 : f32
    %187 = vector.broadcast %cst_129 : f32 to vector<16x17xf32>
    %188 = arith.subf %186, %187 : vector<16x17xf32>
    %cst_130 = arith.constant 1.67326319 : f32
    %189 = vector.broadcast %cst_130 : f32 to vector<16x17xf32>
    %190 = arith.mulf %189, %188 : vector<16x17xf32>
    %191 = arith.select %185, %183, %190 : vector<16x17xi1>, vector<16x17xf32>
    %cst_131 = arith.constant 1.05070102 : f32
    %192 = vector.broadcast %cst_131 : f32 to vector<16x17xf32>
    %193 = arith.mulf %192, %191 : vector<16x17xf32>
    %cst_132 = arith.constant dense<0.000000e+00> : vector<16x16xf32>
    %194 = tpu.matmul %193, %193, %cst_132 {dimension_numbers = #tpu.dot_dimension_numbers<[1], [1], [0], [0], [0, 0, 1, 0], [], []>} : vector<16x17xf32>, vector<16x17xf32>, vector<16x16xf32> -> vector<16x16xf32>
    %cst_133 = arith.constant 6.250000e-02 : f32
    %195 = vector.broadcast %cst_133 : f32 to vector<16x16xf32>
    %196 = arith.mulf %194, %195 : vector<16x16xf32>
    %c0_134 = arith.constant 0 : index
    %c0_135 = arith.constant 0 : index
    %c0_136 = arith.constant 0 : index
    %197 = vector.load %arg5[%c0_134, %c0_135, %c0_136] : memref<1x16x16xf32, #tpu.memory_space<vmem>>, vector<1x16x16xf32>
    %198 = vector.shape_cast %197 : vector<1x16x16xf32> to vector<16x16xf32>
    %199 = vector.shape_cast %196 : vector<16x16xf32> to vector<1x16x16xf32>
    tpu.vector_store %arg5[%c0_134, %c0_135, %c0_136], %199 {strides = array<i32>} : memref<1x16x16xf32, #tpu.memory_space<vmem>>, vector<1x16x16xf32>,
    %c2_137 = arith.constant 2 : index
    %c0_138 = arith.constant 0 : index
    %c0_139 = arith.constant 0 : index
    %200 = vector.load %arg1[%c2_137, %c0_138, %c0_139] : memref<3x5x32xf32, #tpu.memory_space<vmem>>, vector<1x5x32xf32>
    %201 = vector.shape_cast %200 : vector<1x5x32xf32> to vector<5x32xf32>
    %cst_140 = arith.constant 0.000000e+00 : f32
    %202 = vector.broadcast %cst_140 : f32 to vector<16x17xf32>
    %c0_141 = arith.constant 0 : index
    %c0_142 = arith.constant 0 : index
    %c0_143 = arith.constant 0 : index
    %203 = vector.load %arg2[%c0_141, %c0_142, %c0_143] : memref<16x16x5xf32, #tpu.memory_space<vmem>>, vector<1x16x5xf32>
    %204 = vector.shape_cast %203 : vector<1x16x5xf32> to vector<16x5xf32>
    %205 = vector.extract_strided_slice %201 {offsets = [0, 0], sizes = [5, 17], strides = [1, 1]} : vector<5x32xf32> to vector<5x17xf32>
    %cst_144 = arith.constant dense<0.000000e+00> : vector<16x17xf32>
    %206 = tpu.matmul %204, %205, %cst_144 {dimension_numbers = #tpu.dot_dimension_numbers<[1], [0], [0], [1], [0, 0, 1, 1], [], []>} : vector<16x5xf32>, vector<5x17xf32>, vector<16x17xf32> -> vector<16x17xf32>
    %207 = arith.addf %202, %206 : vector<16x17xf32>
    %c1_145 = arith.constant 1 : index
    %c0_146 = arith.constant 0 : index
    %c0_147 = arith.constant 0 : index
    %208 = vector.load %arg2[%c1_145, %c0_146, %c0_147] : memref<16x16x5xf32, #tpu.memory_space<vmem>>, vector<1x16x5xf32>
    %209 = vector.shape_cast %208 : vector<1x16x5xf32> to vector<16x5xf32>
    %210 = vector.extract_strided_slice %201 {offsets = [0, 1], sizes = [5, 17], strides = [1, 1]} : vector<5x32xf32> to vector<5x17xf32>
    %cst_148 = arith.constant dense<0.000000e+00> : vector<16x17xf32>
    %211 = tpu.matmul %209, %210, %cst_148 {dimension_numbers = #tpu.dot_dimension_numbers<[1], [0], [0], [1], [0, 0, 1, 1], [], []>} : vector<16x5xf32>, vector<5x17xf32>, vector<16x17xf32> -> vector<16x17xf32>
    %212 = arith.addf %207, %211 : vector<16x17xf32>
    %c2_149 = arith.constant 2 : index
    %c0_150 = arith.constant 0 : index
    %c0_151 = arith.constant 0 : index
    %213 = vector.load %arg2[%c2_149, %c0_150, %c0_151] : memref<16x16x5xf32, #tpu.memory_space<vmem>>, vector<1x16x5xf32>
    %214 = vector.shape_cast %213 : vector<1x16x5xf32> to vector<16x5xf32>
    %215 = vector.extract_strided_slice %201 {offsets = [0, 2], sizes = [5, 17], strides = [1, 1]} : vector<5x32xf32> to vector<5x17xf32>
    %cst_152 = arith.constant dense<0.000000e+00> : vector<16x17xf32>
    %216 = tpu.matmul %214, %215, %cst_152 {dimension_numbers = #tpu.dot_dimension_numbers<[1], [0], [0], [1], [0, 0, 1, 1], [], []>} : vector<16x5xf32>, vector<5x17xf32>, vector<16x17xf32> -> vector<16x17xf32>
    %217 = arith.addf %212, %216 : vector<16x17xf32>
    %c3_153 = arith.constant 3 : index
    %c0_154 = arith.constant 0 : index
    %c0_155 = arith.constant 0 : index
    %218 = vector.load %arg2[%c3_153, %c0_154, %c0_155] : memref<16x16x5xf32, #tpu.memory_space<vmem>>, vector<1x16x5xf32>
    %219 = vector.shape_cast %218 : vector<1x16x5xf32> to vector<16x5xf32>
    %220 = vector.extract_strided_slice %201 {offsets = [0, 3], sizes = [5, 17], strides = [1, 1]} : vector<5x32xf32> to vector<5x17xf32>
    %cst_156 = arith.constant dense<0.000000e+00> : vector<16x17xf32>
    %221 = tpu.matmul %219, %220, %cst_156 {dimension_numbers = #tpu.dot_dimension_numbers<[1], [0], [0], [1], [0, 0, 1, 1], [], []>} : vector<16x5xf32>, vector<5x17xf32>, vector<16x17xf32> -> vector<16x17xf32>
    %222 = arith.addf %217, %221 : vector<16x17xf32>
    %c4_157 = arith.constant 4 : index
    %c0_158 = arith.constant 0 : index
    %c0_159 = arith.constant 0 : index
    %223 = vector.load %arg2[%c4_157, %c0_158, %c0_159] : memref<16x16x5xf32, #tpu.memory_space<vmem>>, vector<1x16x5xf32>
    %224 = vector.shape_cast %223 : vector<1x16x5xf32> to vector<16x5xf32>
    %225 = vector.extract_strided_slice %201 {offsets = [0, 4], sizes = [5, 17], strides = [1, 1]} : vector<5x32xf32> to vector<5x17xf32>
    %cst_160 = arith.constant dense<0.000000e+00> : vector<16x17xf32>
    %226 = tpu.matmul %224, %225, %cst_160 {dimension_numbers = #tpu.dot_dimension_numbers<[1], [0], [0], [1], [0, 0, 1, 1], [], []>} : vector<16x5xf32>, vector<5x17xf32>, vector<16x17xf32> -> vector<16x17xf32>
    %227 = arith.addf %222, %226 : vector<16x17xf32>
    %c5_161 = arith.constant 5 : index
    %c0_162 = arith.constant 0 : index
    %c0_163 = arith.constant 0 : index
    %228 = vector.load %arg2[%c5_161, %c0_162, %c0_163] : memref<16x16x5xf32, #tpu.memory_space<vmem>>, vector<1x16x5xf32>
    %229 = vector.shape_cast %228 : vector<1x16x5xf32> to vector<16x5xf32>
    %230 = vector.extract_strided_slice %201 {offsets = [0, 5], sizes = [5, 17], strides = [1, 1]} : vector<5x32xf32> to vector<5x17xf32>
    %cst_164 = arith.constant dense<0.000000e+00> : vector<16x17xf32>
    %231 = tpu.matmul %229, %230, %cst_164 {dimension_numbers = #tpu.dot_dimension_numbers<[1], [0], [0], [1], [0, 0, 1, 1], [], []>} : vector<16x5xf32>, vector<5x17xf32>, vector<16x17xf32> -> vector<16x17xf32>
    %232 = arith.addf %227, %231 : vector<16x17xf32>
    %c6_165 = arith.constant 6 : index
    %c0_166 = arith.constant 0 : index
    %c0_167 = arith.constant 0 : index
    %233 = vector.load %arg2[%c6_165, %c0_166, %c0_167] : memref<16x16x5xf32, #tpu.memory_space<vmem>>, vector<1x16x5xf32>
    %234 = vector.shape_cast %233 : vector<1x16x5xf32> to vector<16x5xf32>
    %235 = vector.extract_strided_slice %201 {offsets = [0, 6], sizes = [5, 17], strides = [1, 1]} : vector<5x32xf32> to vector<5x17xf32>
    %cst_168 = arith.constant dense<0.000000e+00> : vector<16x17xf32>
    %236 = tpu.matmul %234, %235, %cst_168 {dimension_numbers = #tpu.dot_dimension_numbers<[1], [0], [0], [1], [0, 0, 1, 1], [], []>} : vector<16x5xf32>, vector<5x17xf32>, vector<16x17xf32> -> vector<16x17xf32>
    %237 = arith.addf %232, %236 : vector<16x17xf32>
    %c7_169 = arith.constant 7 : index
    %c0_170 = arith.constant 0 : index
    %c0_171 = arith.constant 0 : index
    %238 = vector.load %arg2[%c7_169, %c0_170, %c0_171] : memref<16x16x5xf32, #tpu.memory_space<vmem>>, vector<1x16x5xf32>
    %239 = vector.shape_cast %238 : vector<1x16x5xf32> to vector<16x5xf32>
    %240 = vector.extract_strided_slice %201 {offsets = [0, 7], sizes = [5, 17], strides = [1, 1]} : vector<5x32xf32> to vector<5x17xf32>
    %cst_172 = arith.constant dense<0.000000e+00> : vector<16x17xf32>
    %241 = tpu.matmul %239, %240, %cst_172 {dimension_numbers = #tpu.dot_dimension_numbers<[1], [0], [0], [1], [0, 0, 1, 1], [], []>} : vector<16x5xf32>, vector<5x17xf32>, vector<16x17xf32> -> vector<16x17xf32>
    %242 = arith.addf %237, %241 : vector<16x17xf32>
    %c8_173 = arith.constant 8 : index
    %c0_174 = arith.constant 0 : index
    %c0_175 = arith.constant 0 : index
    %243 = vector.load %arg2[%c8_173, %c0_174, %c0_175] : memref<16x16x5xf32, #tpu.memory_space<vmem>>, vector<1x16x5xf32>
    %244 = vector.shape_cast %243 : vector<1x16x5xf32> to vector<16x5xf32>
    %245 = vector.extract_strided_slice %201 {offsets = [0, 8], sizes = [5, 17], strides = [1, 1]} : vector<5x32xf32> to vector<5x17xf32>
    %cst_176 = arith.constant dense<0.000000e+00> : vector<16x17xf32>
    %246 = tpu.matmul %244, %245, %cst_176 {dimension_numbers = #tpu.dot_dimension_numbers<[1], [0], [0], [1], [0, 0, 1, 1], [], []>} : vector<16x5xf32>, vector<5x17xf32>, vector<16x17xf32> -> vector<16x17xf32>
    %247 = arith.addf %242, %246 : vector<16x17xf32>
    %c9_177 = arith.constant 9 : index
    %c0_178 = arith.constant 0 : index
    %c0_179 = arith.constant 0 : index
    %248 = vector.load %arg2[%c9_177, %c0_178, %c0_179] : memref<16x16x5xf32, #tpu.memory_space<vmem>>, vector<1x16x5xf32>
    %249 = vector.shape_cast %248 : vector<1x16x5xf32> to vector<16x5xf32>
    %250 = vector.extract_strided_slice %201 {offsets = [0, 9], sizes = [5, 17], strides = [1, 1]} : vector<5x32xf32> to vector<5x17xf32>
    %cst_180 = arith.constant dense<0.000000e+00> : vector<16x17xf32>
    %251 = tpu.matmul %249, %250, %cst_180 {dimension_numbers = #tpu.dot_dimension_numbers<[1], [0], [0], [1], [0, 0, 1, 1], [], []>} : vector<16x5xf32>, vector<5x17xf32>, vector<16x17xf32> -> vector<16x17xf32>
    %252 = arith.addf %247, %251 : vector<16x17xf32>
    %c10_181 = arith.constant 10 : index
    %c0_182 = arith.constant 0 : index
    %c0_183 = arith.constant 0 : index
    %253 = vector.load %arg2[%c10_181, %c0_182, %c0_183] : memref<16x16x5xf32, #tpu.memory_space<vmem>>, vector<1x16x5xf32>
    %254 = vector.shape_cast %253 : vector<1x16x5xf32> to vector<16x5xf32>
    %255 = vector.extract_strided_slice %201 {offsets = [0, 10], sizes = [5, 17], strides = [1, 1]} : vector<5x32xf32> to vector<5x17xf32>
    %cst_184 = arith.constant dense<0.000000e+00> : vector<16x17xf32>
    %256 = tpu.matmul %254, %255, %cst_184 {dimension_numbers = #tpu.dot_dimension_numbers<[1], [0], [0], [1], [0, 0, 1, 1], [], []>} : vector<16x5xf32>, vector<5x17xf32>, vector<16x17xf32> -> vector<16x17xf32>
    %257 = arith.addf %252, %256 : vector<16x17xf32>
    %c11_185 = arith.constant 11 : index
    %c0_186 = arith.constant 0 : index
    %c0_187 = arith.constant 0 : index
    %258 = vector.load %arg2[%c11_185, %c0_186, %c0_187] : memref<16x16x5xf32, #tpu.memory_space<vmem>>, vector<1x16x5xf32>
    %259 = vector.shape_cast %258 : vector<1x16x5xf32> to vector<16x5xf32>
    %260 = vector.extract_strided_slice %201 {offsets = [0, 11], sizes = [5, 17], strides = [1, 1]} : vector<5x32xf32> to vector<5x17xf32>
    %cst_188 = arith.constant dense<0.000000e+00> : vector<16x17xf32>
    %261 = tpu.matmul %259, %260, %cst_188 {dimension_numbers = #tpu.dot_dimension_numbers<[1], [0], [0], [1], [0, 0, 1, 1], [], []>} : vector<16x5xf32>, vector<5x17xf32>, vector<16x17xf32> -> vector<16x17xf32>
    %262 = arith.addf %257, %261 : vector<16x17xf32>
    %c12_189 = arith.constant 12 : index
    %c0_190 = arith.constant 0 : index
    %c0_191 = arith.constant 0 : index
    %263 = vector.load %arg2[%c12_189, %c0_190, %c0_191] : memref<16x16x5xf32, #tpu.memory_space<vmem>>, vector<1x16x5xf32>
    %264 = vector.shape_cast %263 : vector<1x16x5xf32> to vector<16x5xf32>
    %265 = vector.extract_strided_slice %201 {offsets = [0, 12], sizes = [5, 17], strides = [1, 1]} : vector<5x32xf32> to vector<5x17xf32>
    %cst_192 = arith.constant dense<0.000000e+00> : vector<16x17xf32>
    %266 = tpu.matmul %264, %265, %cst_192 {dimension_numbers = #tpu.dot_dimension_numbers<[1], [0], [0], [1], [0, 0, 1, 1], [], []>} : vector<16x5xf32>, vector<5x17xf32>, vector<16x17xf32> -> vector<16x17xf32>
    %267 = arith.addf %262, %266 : vector<16x17xf32>
    %c13_193 = arith.constant 13 : index
    %c0_194 = arith.constant 0 : index
    %c0_195 = arith.constant 0 : index
    %268 = vector.load %arg2[%c13_193, %c0_194, %c0_195] : memref<16x16x5xf32, #tpu.memory_space<vmem>>, vector<1x16x5xf32>
    %269 = vector.shape_cast %268 : vector<1x16x5xf32> to vector<16x5xf32>
    %270 = vector.extract_strided_slice %201 {offsets = [0, 13], sizes = [5, 17], strides = [1, 1]} : vector<5x32xf32> to vector<5x17xf32>
    %cst_196 = arith.constant dense<0.000000e+00> : vector<16x17xf32>
    %271 = tpu.matmul %269, %270, %cst_196 {dimension_numbers = #tpu.dot_dimension_numbers<[1], [0], [0], [1], [0, 0, 1, 1], [], []>} : vector<16x5xf32>, vector<5x17xf32>, vector<16x17xf32> -> vector<16x17xf32>
    %272 = arith.addf %267, %271 : vector<16x17xf32>
    %c14_197 = arith.constant 14 : index
    %c0_198 = arith.constant 0 : index
    %c0_199 = arith.constant 0 : index
    %273 = vector.load %arg2[%c14_197, %c0_198, %c0_199] : memref<16x16x5xf32, #tpu.memory_space<vmem>>, vector<1x16x5xf32>
    %274 = vector.shape_cast %273 : vector<1x16x5xf32> to vector<16x5xf32>
    %275 = vector.extract_strided_slice %201 {offsets = [0, 14], sizes = [5, 17], strides = [1, 1]} : vector<5x32xf32> to vector<5x17xf32>
    %cst_200 = arith.constant dense<0.000000e+00> : vector<16x17xf32>
    %276 = tpu.matmul %274, %275, %cst_200 {dimension_numbers = #tpu.dot_dimension_numbers<[1], [0], [0], [1], [0, 0, 1, 1], [], []>} : vector<16x5xf32>, vector<5x17xf32>, vector<16x17xf32> -> vector<16x17xf32>
    %277 = arith.addf %272, %276 : vector<16x17xf32>
    %c15_201 = arith.constant 15 : index
    %c0_202 = arith.constant 0 : index
    %c0_203 = arith.constant 0 : index
    %278 = vector.load %arg2[%c15_201, %c0_202, %c0_203] : memref<16x16x5xf32, #tpu.memory_space<vmem>>, vector<1x16x5xf32>
    %279 = vector.shape_cast %278 : vector<1x16x5xf32> to vector<16x5xf32>
    %280 = vector.extract_strided_slice %201 {offsets = [0, 15], sizes = [5, 17], strides = [1, 1]} : vector<5x32xf32> to vector<5x17xf32>
    %cst_204 = arith.constant dense<0.000000e+00> : vector<16x17xf32>
    %281 = tpu.matmul %279, %280, %cst_204 {dimension_numbers = #tpu.dot_dimension_numbers<[1], [0], [0], [1], [0, 0, 1, 1], [], []>} : vector<16x5xf32>, vector<5x17xf32>, vector<16x17xf32> -> vector<16x17xf32>
    %282 = arith.addf %277, %281 : vector<16x17xf32>
    %283 = vector.broadcast %0 : vector<16x1xf32> to vector<16x17xf32>
    %284 = arith.addf %282, %283 : vector<16x17xf32>
    %cst_205 = arith.constant 0.000000e+00 : f32
    %285 = vector.broadcast %cst_205 : f32 to vector<16x17xf32>
    %286 = arith.cmpf ogt, %284, %285 : vector<16x17xf32>
    %287 = math.exp %284 : vector<16x17xf32>
    %cst_206 = arith.constant 1.000000e+00 : f32
    %288 = vector.broadcast %cst_206 : f32 to vector<16x17xf32>
    %289 = arith.subf %287, %288 : vector<16x17xf32>
    %cst_207 = arith.constant 1.67326319 : f32
    %290 = vector.broadcast %cst_207 : f32 to vector<16x17xf32>
    %291 = arith.mulf %290, %289 : vector<16x17xf32>
    %292 = arith.select %286, %284, %291 : vector<16x17xi1>, vector<16x17xf32>
    %cst_208 = arith.constant 1.05070102 : f32
    %293 = vector.broadcast %cst_208 : f32 to vector<16x17xf32>
    %294 = arith.mulf %293, %292 : vector<16x17xf32>
    %c0_209 = arith.constant 0 : index
    %c0_210 = arith.constant 0 : index
    %c0_211 = arith.constant 0 : index
    %295 = vector.load %arg6[%c0_209, %c0_210, %c0_211] : memref<1x16x17xf32, #tpu.memory_space<vmem>>, vector<1x16x17xf32>
    %296 = vector.shape_cast %295 : vector<1x16x17xf32> to vector<16x17xf32>
    %297 = vector.shape_cast %294 : vector<16x17xf32> to vector<1x16x17xf32>
    tpu.vector_store %arg6[%c0_209, %c0_210, %c0_211], %297 {strides = array<i32>} : memref<1x16x17xf32, #tpu.memory_space<vmem>>, vector<1x16x17xf32>,
    %cst_212 = arith.constant dense<0.000000e+00> : vector<16x16xf32>
    %298 = tpu.matmul %294, %294, %cst_212 {dimension_numbers = #tpu.dot_dimension_numbers<[1], [1], [0], [0], [0, 0, 1, 0], [], []>} : vector<16x17xf32>, vector<16x17xf32>, vector<16x16xf32> -> vector<16x16xf32>
    %cst_213 = arith.constant 6.250000e-02 : f32
    %299 = vector.broadcast %cst_213 : f32 to vector<16x16xf32>
    %300 = arith.mulf %298, %299 : vector<16x16xf32>
    %c0_214 = arith.constant 0 : index
    %c0_215 = arith.constant 0 : index
    %c0_216 = arith.constant 0 : index
    %301 = vector.load %arg7[%c0_214, %c0_215, %c0_216] : memref<1x16x16xf32, #tpu.memory_space<vmem>>, vector<1x16x16xf32>
    %302 = vector.shape_cast %301 : vector<1x16x16xf32> to vector<16x16xf32>
    %303 = vector.shape_cast %300 : vector<16x16xf32> to vector<1x16x16xf32>
    tpu.vector_store %arg7[%c0_214, %c0_215, %c0_216], %303 {strides = array<i32>} : memref<1x16x16xf32, #tpu.memory_space<vmem>>, vector<1x16x16xf32>,
    return
  }
  func.func @transform_0(%arg0: i32) -> (i32, i32, i32) {
    %c0_i32 = arith.constant 0 : i32
    %c0_i32_0 = arith.constant 0 : i32
    %c0_i32_1 = arith.constant 0 : i32
    %c0_i32_2 = arith.constant 0 : i32
    return %c0_i32, %c0_i32_0, %c0_i32_1 : i32, i32, i32
  }
  func.func @transform_1(%arg0: i32) -> (i32, i32, i32) {
    %c0_i32 = arith.constant 0 : i32
    %c0_i32_0 = arith.constant 0 : i32
    %c0_i32_1 = arith.constant 0 : i32
    %c0_i32_2 = arith.constant 0 : i32
    return %c0_i32, %c0_i32_0, %c0_i32_1 : i32, i32, i32
  }
  func.func @transform_2(%arg0: i32) -> (i32, i32) {
    %c0_i32 = arith.constant 0 : i32
    %c0_i32_0 = arith.constant 0 : i32
    %c0_i32_1 = arith.constant 0 : i32
    return %c0_i32, %c0_i32_0 : i32, i32
  }
  func.func @transform_3(%arg0: i32) -> (i32, i32, i32) {
    %c0_i32 = arith.constant 0 : i32
    %c0_i32_0 = arith.constant 0 : i32
    %c0_i32_1 = arith.constant 0 : i32
    %c0_i32_2 = arith.constant 0 : i32
    return %c0_i32, %c0_i32_0, %c0_i32_1 : i32, i32, i32
  }
  func.func @transform_4(%arg0: i32) -> (i32, i32, i32) {
    %c0_i32 = arith.constant 0 : i32
    %c0_i32_0 = arith.constant 0 : i32
    %c0_i32_1 = arith.constant 0 : i32
    %c0_i32_2 = arith.constant 0 : i32
    return %c0_i32, %c0_i32_0, %c0_i32_1 : i32, i32, i32
  }
  func.func @transform_5(%arg0: i32) -> (i32, i32, i32) {
    %c0_i32 = arith.constant 0 : i32
    %c0_i32_0 = arith.constant 0 : i32
    %c0_i32_1 = arith.constant 0 : i32
    %c0_i32_2 = arith.constant 0 : i32
    return %c0_i32, %c0_i32_0, %c0_i32_1 : i32, i32, i32
  }
  func.func @transform_6(%arg0: i32) -> (i32, i32, i32) {
    %c0_i32 = arith.constant 0 : i32
    %c0_i32_0 = arith.constant 0 : i32
    %c0_i32_1 = arith.constant 0 : i32
    %c0_i32_2 = arith.constant 0 : i32
    return %c0_i32, %c0_i32_0, %c0_i32_1 : i32, i32, i32
  }
}

</mosaic_0001>

<llo_original>
// kernel: neural_network_forward.1
$region0: #{neural_network_forward.1}
  #allocation0 [shape = 'u32[]', space=smem, size = 0x4, offset = 0x4, fixed_abs, tag = 'smem constant byte address 0x4 - core index']
  #allocation1 [shape = 'u32[72,128]{1,0:T(1,128)}', space=vmem, size = 0x9000, scoped, tag = 'internal scratch']
  %s0 = inlined_call_operand.vmem [shape: f32[3,5,32], index: 0, kind: input, shape index: {}]
  %s1 = inlined_call_operand.vmem [shape: f32[16,16,5], index: 1, kind: input, shape index: {}]
  %s2 = inlined_call_operand.vmem [shape: f32[16,1], index: 2, kind: input, shape index: {}]
  %s3 = inlined_call_operand.hbm [shape: f32[1,16,17], index: 3, kind: output, shape index: {0}]
  %s4 = inlined_call_operand.hbm [shape: f32[1,16,16], index: 4, kind: output, shape index: {1}]
  %s5 = inlined_call_operand.hbm [shape: f32[1,16,17], index: 5, kind: output, shape index: {2}]
  %s6 = inlined_call_operand.hbm [shape: f32[1,16,16], index: 6, kind: output, shape index: {3}]
  %7 = xla_tuple %s3, %s4, %s5, %s6
  %s8 = sld [smem:[#allocation0]]
  $region46: #{neural_network_forward.1} parent=0
    _
  %s10 = ssub.s32 1, %s8
  %s11 = scalar_select 0, %s10, %s8
  $region1: #{neural_network_forward.1} parent=0
    #allocation2 [shape = 'u8[8192]{0}', space=vmem, size = 0x2000, scoped, tag = 'output window, operand 0, single buffered']
    #allocation3 [shape = 's32[1]{0}', space=sflag, size = 0x4, scoped, tag = 'scoped memory for neural_network_forward.1']
    #allocation4 [shape = 'u8[8192]{0}', space=vmem, size = 0x2000, scoped, tag = 'output window, operand 1, single buffered']
    #allocation5 [shape = 's32[1]{0}', space=sflag, size = 0x4, scoped, tag = 'scoped memory for neural_network_forward.1']
    #allocation6 [shape = 'u8[8192]{0}', space=vmem, size = 0x2000, scoped, tag = 'output window, operand 2, single buffered']
    #allocation7 [shape = 'u8[8192]{0}', space=vmem, size = 0x2000, scoped, tag = 'output window, operand 3, single buffered']
    #allocation8 [shape = 's32[1]{0}', space=sflag, size = 0x4, scoped, tag = 'scoped memory for neural_network_forward.1']
    %12 = vsyncpa [#allocation3], 0
    %13 = vsyncpa [#allocation5], 0
    %14 = vsyncpa [#allocation8], 0
    // Predicated region
    $region2: #{neural_network_forward.1} parent=1 // pred_check
      _
    $region3: #{neural_network_forward.1} parent=1 // pred_check_branch
      %16 = sbr.rel (0) target = $region5
    $region4: #{neural_network_forward.1} parent=1 // pred_region
      _
    $region5: #{neural_network_forward.1} parent=1 // pred_fallthru
      _
    // Predicated region
    $region6: #{neural_network_forward.1} parent=1 // pred_check
      _
    $region7: #{neural_network_forward.1} parent=1 // pred_check_branch
      %18 = sbr.rel (0) target = $region9
    $region8: #{neural_network_forward.1} parent=1 // pred_region
      _
    $region9: #{neural_network_forward.1} parent=1 // pred_fallthru
      _
    // Predicated region
    $region10: #{neural_network_forward.1} parent=1 // pred_check
      _
    $region11: #{neural_network_forward.1} parent=1 // pred_check_branch
      %20 = sbr.rel (0) target = $region13
    $region12: #{neural_network_forward.1} parent=1 // pred_region
      _
    $region13: #{neural_network_forward.1} parent=1 // pred_fallthru
      _
    %v21 = vld [vmem:[%s2] sm:$0xff]
    %v22 = vld [vmem:[%s2 + $0x8] sm:$0xff]
    %v23 = vld [vmem:[%s0] sm:$0x1f]
    %v24 = vld [vmem:[%s1] sm:$0xff]
    %v25 = vld [vmem:[%s1 + $0x8] sm:$0xff]
    %s26 = scalar_lea.vmem %s1, 16
    %v27 = vld [vmem:[%s26] sm:$0xff]
    %v28 = vld [vmem:[%s26 + $0x8] sm:$0xff]
    %30 = vrot.lane.b32.xlu0 %v23, 127
    %v31 = vpop.permute.xlu0 %30
    %vm32 = vcmask 39936
    %v34 = vsel %vm32, %v27, 0
    %v37 = vsel %vm32, %v28, 0
    %vm39 = vcmask 1044480
    %v40 = vsel %vm39, %v31, 0
    %42 = vmatpush.msra.mxu0 0.0
    %43 = vmatpush.msra.mxu0 0.0
    %44 = vmatpush.msra.mxu0 0.0
    %45 = vmatpush.msra.mxu0 0.0
    %46 = vmatpush.msra.mxu0 0.0
    %47 = vmatpush.msra.mxu0 0.0
    %48 = vmatpush.msra.mxu0 0.0
    %49 = vmatpush.msra.mxu0 0.0
    %50 = vmatpush.msra.mxu0 0.0
    %51 = vmatpush.msra.mxu0 0.0
    %52 = vmatpush.msra.mxu0 0.0
    %53 = vmatpush.msra.mxu0 0.0
    %54 = vmatpush.msra.mxu0 0.0
    %55 = vmatpush.msra.mxu0 0.0
    %56 = vmatpush.msra.mxu0 0.0
    %57 = vmatpush.msra.mxu0 %v40
    %58 = vmatmul.f32.gmra.mxu0 %v34
    %v59 = vpop.f32.mrf.mxu0
    %v60 = vadd.f32 0.0, %v59
    %61 = vmatmul.f32.gmra.mxu0 %v37
    %v62 = vpop.f32.mrf.mxu0
    %v63 = vadd.f32 0.0, %v62
    %64 = vdwg.mxu0
    %v66 = vsel %vm32, %v24, 0
    %v69 = vsel %vm32, %v25, 0
    %v71 = vsel %vm39, %v23, 0
    %73 = vmatpush.msra.mxu0 0.0
    %74 = vmatpush.msra.mxu0 0.0
    %75 = vmatpush.msra.mxu0 0.0
    %76 = vmatpush.msra.mxu0 0.0
    %77 = vmatpush.msra.mxu0 0.0
    %78 = vmatpush.msra.mxu0 0.0
    %79 = vmatpush.msra.mxu0 0.0
    %80 = vmatpush.msra.mxu0 0.0
    %81 = vmatpush.msra.mxu0 0.0
    %82 = vmatpush.msra.mxu0 0.0
    %83 = vmatpush.msra.mxu0 0.0
    %84 = vmatpush.msra.mxu0 0.0
    %85 = vmatpush.msra.mxu0 0.0
    %86 = vmatpush.msra.mxu0 0.0
    %87 = vmatpush.msra.mxu0 0.0
    %88 = vmatpush.msra.mxu0 %v71
    %89 = vmatmul.f32.gmra.mxu0 %v66
    %v90 = vpop.f32.mrf.mxu0
    %v91 = vadd.f32 %v60, %v90
    %92 = vmatmul.f32.gmra.mxu0 %v69
    %v93 = vpop.f32.mrf.mxu0
    %v94 = vadd.f32 %v63, %v93
    %95 = vdwg.mxu0
    %s96 = scalar_lea.vmem %s1, 32
    %v97 = vld [vmem:[%s96] sm:$0xff]
    %v98 = vld [vmem:[%s96 + $0x8] sm:$0xff]
    %99 = vrot.lane.b32.xlu0 %v23, 126
    %v100 = vpop.permute.xlu0 %99
    %v102 = vsel %vm32, %v97, 0
    %v105 = vsel %vm32, %v98, 0
    %v107 = vsel %vm39, %v100, 0
    %109 = vmatpush.msra.mxu0 0.0
    %110 = vmatpush.msra.mxu0 0.0
    %111 = vmatpush.msra.mxu0 0.0
    %112 = vmatpush.msra.mxu0 0.0
    %113 = vmatpush.msra.mxu0 0.0
    %114 = vmatpush.msra.mxu0 0.0
    %115 = vmatpush.msra.mxu0 0.0
    %116 = vmatpush.msra.mxu0 0.0
    %117 = vmatpush.msra.mxu0 0.0
    %118 = vmatpush.msra.mxu0 0.0
    %119 = vmatpush.msra.mxu0 0.0
    %120 = vmatpush.msra.mxu0 0.0
    %121 = vmatpush.msra.mxu0 0.0
    %122 = vmatpush.msra.mxu0 0.0
    %123 = vmatpush.msra.mxu0 0.0
    %124 = vmatpush.msra.mxu0 %v107
    %125 = vmatmul.f32.gmra.mxu0 %v102
    %v126 = vpop.f32.mrf.mxu0
    %v127 = vadd.f32 0.0, %v126
    %128 = vmatmul.f32.gmra.mxu0 %v105
    %v129 = vpop.f32.mrf.mxu0
    %v130 = vadd.f32 0.0, %v129
    %131 = vdwg.mxu0
    %v132 = vadd.f32 %v91, %v127
    %v133 = vadd.f32 %v94, %v130
    %s134 = scalar_lea.vmem %s1, 48
    %v135 = vld [vmem:[%s134] sm:$0xff]
    %v136 = vld [vmem:[%s134 + $0x8] sm:$0xff]
    %137 = vrot.lane.b32.xlu0 %v23, 125
    %v138 = vpop.permute.xlu0 %137
    %v140 = vsel %vm32, %v135, 0
    %v143 = vsel %vm32, %v136, 0
    %v145 = vsel %vm39, %v138, 0
    %147 = vmatpush.msra.mxu0 0.0
    %148 = vmatpush.msra.mxu0 0.0
    %149 = vmatpush.msra.mxu0 0.0
    %150 = vmatpush.msra.mxu0 0.0
    %151 = vmatpush.msra.mxu0 0.0
    %152 = vmatpush.msra.mxu0 0.0
    %153 = vmatpush.msra.mxu0 0.0
    %154 = vmatpush.msra.mxu0 0.0
    %155 = vmatpush.msra.mxu0 0.0
    %156 = vmatpush.msra.mxu0 0.0
    %157 = vmatpush.msra.mxu0 0.0
    %158 = vmatpush.msra.mxu0 0.0
    %159 = vmatpush.msra.mxu0 0.0
    %160 = vmatpush.msra.mxu0 0.0
    %161 = vmatpush.msra.mxu0 0.0
    %162 = vmatpush.msra.mxu0 %v145
    %163 = vmatmul.f32.gmra.mxu0 %v140
    %v164 = vpop.f32.mrf.mxu0
    %v165 = vadd.f32 0.0, %v164
    %166 = vmatmul.f32.gmra.mxu0 %v143
    %v167 = vpop.f32.mrf.mxu0
    %v168 = vadd.f32 0.0, %v167
    %169 = vdwg.mxu0
    %v170 = vadd.f32 %v132, %v165
    %v171 = vadd.f32 %v133, %v168
    %s172 = scalar_lea.vmem %s1, 64
    %v173 = vld [vmem:[%s172] sm:$0xff]
    %v174 = vld [vmem:[%s172 + $0x8] sm:$0xff]
    %175 = vrot.lane.b32.xlu0 %v23, 124
    %v176 = vpop.permute.xlu0 %175
    %v178 = vsel %vm32, %v173, 0
    %v181 = vsel %vm32, %v174, 0
    %v183 = vsel %vm39, %v176, 0
    %185 = vmatpush.msra.mxu0 0.0
    %186 = vmatpush.msra.mxu0 0.0
    %187 = vmatpush.msra.mxu0 0.0
    %188 = vmatpush.msra.mxu0 0.0
    %189 = vmatpush.msra.mxu0 0.0
    %190 = vmatpush.msra.mxu0 0.0
    %191 = vmatpush.msra.mxu0 0.0
    %192 = vmatpush.msra.mxu0 0.0
    %193 = vmatpush.msra.mxu0 0.0
    %194 = vmatpush.msra.mxu0 0.0
    %195 = vmatpush.msra.mxu0 0.0
    %196 = vmatpush.msra.mxu0 0.0
    %197 = vmatpush.msra.mxu0 0.0
    %198 = vmatpush.msra.mxu0 0.0
    %199 = vmatpush.msra.mxu0 0.0
    %200 = vmatpush.msra.mxu0 %v183
    %201 = vmatmul.f32.gmra.mxu0 %v178
    %v202 = vpop.f32.mrf.mxu0
    %v203 = vadd.f32 0.0, %v202
    %204 = vmatmul.f32.gmra.mxu0 %v181
    %v205 = vpop.f32.mrf.mxu0
    %v206 = vadd.f32 0.0, %v205
    %207 = vdwg.mxu0
    %v208 = vadd.f32 %v170, %v203
    %v209 = vadd.f32 %v171, %v206
    %s210 = scalar_lea.vmem %s1, 80
    %v211 = vld [vmem:[%s210] sm:$0xff]
    %v212 = vld [vmem:[%s210 + $0x8] sm:$0xff]
    %213 = vrot.lane.b32.xlu0 %v23, 123
    %v214 = vpop.permute.xlu0 %213
    %v216 = vsel %vm32, %v211, 0
    %v219 = vsel %vm32, %v212, 0
    %v221 = vsel %vm39, %v214, 0
    %223 = vmatpush.msra.mxu0 0.0
    %224 = vmatpush.msra.mxu0 0.0
    %225 = vmatpush.msra.mxu0 0.0
    %226 = vmatpush.msra.mxu0 0.0
    %227 = vmatpush.msra.mxu0 0.0
    %228 = vmatpush.msra.mxu0 0.0
    %229 = vmatpush.msra.mxu0 0.0
    %230 = vmatpush.msra.mxu0 0.0
    %231 = vmatpush.msra.mxu0 0.0
    %232 = vmatpush.msra.mxu0 0.0
    %233 = vmatpush.msra.mxu0 0.0
    %234 = vmatpush.msra.mxu0 0.0
    %235 = vmatpush.msra.mxu0 0.0
    %236 = vmatpush.msra.mxu0 0.0
    %237 = vmatpush.msra.mxu0 0.0
    %238 = vmatpush.msra.mxu0 %v221
    %239 = vmatmul.f32.gmra.mxu0 %v216
    %v240 = vpop.f32.mrf.mxu0
    %v241 = vadd.f32 0.0, %v240
    %242 = vmatmul.f32.gmra.mxu0 %v219
    %v243 = vpop.f32.mrf.mxu0
    %v244 = vadd.f32 0.0, %v243
    %245 = vdwg.mxu0
    %v246 = vadd.f32 %v208, %v241
    %v247 = vadd.f32 %v209, %v244
    %s248 = scalar_lea.vmem %s1, 96
    %v249 = vld [vmem:[%s248] sm:$0xff]
    %v250 = vld [vmem:[%s248 + $0x8] sm:$0xff]
    %251 = vrot.lane.b32.xlu0 %v23, 122
    %v252 = vpop.permute.xlu0 %251
    %v254 = vsel %vm32, %v249, 0
    %v257 = vsel %vm32, %v250, 0
    %v259 = vsel %vm39, %v252, 0
    %261 = vmatpush.msra.mxu0 0.0
    %262 = vmatpush.msra.mxu0 0.0
    %263 = vmatpush.msra.mxu0 0.0
    %264 = vmatpush.msra.mxu0 0.0
    %265 = vmatpush.msra.mxu0 0.0
    %266 = vmatpush.msra.mxu0 0.0
    %267 = vmatpush.msra.mxu0 0.0
    %268 = vmatpush.msra.mxu0 0.0
    %269 = vmatpush.msra.mxu0 0.0
    %270 = vmatpush.msra.mxu0 0.0
    %271 = vmatpush.msra.mxu0 0.0
    %272 = vmatpush.msra.mxu0 0.0
    %273 = vmatpush.msra.mxu0 0.0
    %274 = vmatpush.msra.mxu0 0.0
    %275 = vmatpush.msra.mxu0 0.0
    %276 = vmatpush.msra.mxu0 %v259
    %277 = vmatmul.f32.gmra.mxu0 %v254
    %v278 = vpop.f32.mrf.mxu0
    %v279 = vadd.f32 0.0, %v278
    %280 = vmatmul.f32.gmra.mxu0 %v257
    %v281 = vpop.f32.mrf.mxu0
    %v282 = vadd.f32 0.0, %v281
    %283 = vdwg.mxu0
    %v284 = vadd.f32 %v246, %v279
    %v285 = vadd.f32 %v247, %v282
    %s286 = scalar_lea.vmem %s1, 112
    %v287 = vld [vmem:[%s286] sm:$0xff]
    %v288 = vld [vmem:[%s286 + $0x8] sm:$0xff]
    %289 = vrot.lane.b32.xlu0 %v23, 121
    %v290 = vpop.permute.xlu0 %289
    %v292 = vsel %vm32, %v287, 0
    %v295 = vsel %vm32, %v288, 0
    %v297 = vsel %vm39, %v290, 0
    %299 = vmatpush.msra.mxu0 0.0
    %300 = vmatpush.msra.mxu0 0.0
    %301 = vmatpush.msra.mxu0 0.0
    %302 = vmatpush.msra.mxu0 0.0
    %303 = vmatpush.msra.mxu0 0.0
    %304 = vmatpush.msra.mxu0 0.0
    %305 = vmatpush.msra.mxu0 0.0
    %306 = vmatpush.msra.mxu0 0.0
    %307 = vmatpush.msra.mxu0 0.0
    %308 = vmatpush.msra.mxu0 0.0
    %309 = vmatpush.msra.mxu0 0.0
    %310 = vmatpush.msra.mxu0 0.0
    %311 = vmatpush.msra.mxu0 0.0
    %312 = vmatpush.msra.mxu0 0.0
    %313 = vmatpush.msra.mxu0 0.0
    %314 = vmatpush.msra.mxu0 %v297
    %315 = vmatmul.f32.gmra.mxu0 %v292
    %v316 = vpop.f32.mrf.mxu0
    %v317 = vadd.f32 0.0, %v316
    %318 = vmatmul.f32.gmra.mxu0 %v295
    %v319 = vpop.f32.mrf.mxu0
    %v320 = vadd.f32 0.0, %v319
    %321 = vdwg.mxu0
    %v322 = vadd.f32 %v284, %v317
    %v323 = vadd.f32 %v285, %v320
    %s324 = scalar_lea.vmem %s1, 128
    %v325 = vld [vmem:[%s324] sm:$0xff]
    %v326 = vld [vmem:[%s324 + $0x8] sm:$0xff]
    %327 = vrot.lane.b32.xlu0 %v23, 120
    %v328 = vpop.permute.xlu0 %327
    %v330 = vsel %vm32, %v325, 0
    %v333 = vsel %vm32, %v326, 0
    %v335 = vsel %vm39, %v328, 0
    %337 = vmatpush.msra.mxu0 0.0
    %338 = vmatpush.msra.mxu0 0.0
    %339 = vmatpush.msra.mxu0 0.0
    %340 = vmatpush.msra.mxu0 0.0
    %341 = vmatpush.msra.mxu0 0.0
    %342 = vmatpush.msra.mxu0 0.0
    %343 = vmatpush.msra.mxu0 0.0
    %344 = vmatpush.msra.mxu0 0.0
    %345 = vmatpush.msra.mxu0 0.0
    %346 = vmatpush.msra.mxu0 0.0
    %347 = vmatpush.msra.mxu0 0.0
    %348 = vmatpush.msra.mxu0 0.0
    %349 = vmatpush.msra.mxu0 0.0
    %350 = vmatpush.msra.mxu0 0.0
    %351 = vmatpush.msra.mxu0 0.0
    %352 = vmatpush.msra.mxu0 %v335
    %353 = vmatmul.f32.gmra.mxu0 %v330
    %v354 = vpop.f32.mrf.mxu0
    %v355 = vadd.f32 0.0, %v354
    %356 = vmatmul.f32.gmra.mxu0 %v333
    %v357 = vpop.f32.mrf.mxu0
    %v358 = vadd.f32 0.0, %v357
    %359 = vdwg.mxu0
    %v360 = vadd.f32 %v322, %v355
    %v361 = vadd.f32 %v323, %v358
    %s362 = scalar_lea.vmem %s1, 144
    %v363 = vld [vmem:[%s362] sm:$0xff]
    %v364 = vld [vmem:[%s362 + $0x8] sm:$0xff]
    %365 = vrot.lane.b32.xlu0 %v23, 119
    %v366 = vpop.permute.xlu0 %365
    %v368 = vsel %vm32, %v363, 0
    %v371 = vsel %vm32, %v364, 0
    %v373 = vsel %vm39, %v366, 0
    %375 = vmatpush.msra.mxu0 0.0
    %376 = vmatpush.msra.mxu0 0.0
    %377 = vmatpush.msra.mxu0 0.0
    %378 = vmatpush.msra.mxu0 0.0
    %379 = vmatpush.msra.mxu0 0.0
    %380 = vmatpush.msra.mxu0 0.0
    %381 = vmatpush.msra.mxu0 0.0
    %382 = vmatpush.msra.mxu0 0.0
    %383 = vmatpush.msra.mxu0 0.0
    %384 = vmatpush.msra.mxu0 0.0
    %385 = vmatpush.msra.mxu0 0.0
    %386 = vmatpush.msra.mxu0 0.0
    %387 = vmatpush.msra.mxu0 0.0
    %388 = vmatpush.msra.mxu0 0.0
    %389 = vmatpush.msra.mxu0 0.0
    %390 = vmatpush.msra.mxu0 %v373
    %391 = vmatmul.f32.gmra.mxu0 %v368
    %v392 = vpop.f32.mrf.mxu0
    %v393 = vadd.f32 0.0, %v392
    %394 = vmatmul.f32.gmra.mxu0 %v371
    %v395 = vpop.f32.mrf.mxu0
    %v396 = vadd.f32 0.0, %v395
    %397 = vdwg.mxu0
    %v398 = vadd.f32 %v360, %v393
    %v399 = vadd.f32 %v361, %v396
    %s400 = scalar_lea.vmem %s1, 160
    %v401 = vld [vmem:[%s400] sm:$0xff]
    %v402 = vld [vmem:[%s400 + $0x8] sm:$0xff]
    %403 = vrot.lane.b32.xlu0 %v23, 118
    %v404 = vpop.permute.xlu0 %403
    %v406 = vsel %vm32, %v401, 0
    %v409 = vsel %vm32, %v402, 0
    %v411 = vsel %vm39, %v404, 0
    %413 = vmatpush.msra.mxu0 0.0
    %414 = vmatpush.msra.mxu0 0.0
    %415 = vmatpush.msra.mxu0 0.0
    %416 = vmatpush.msra.mxu0 0.0
    %417 = vmatpush.msra.mxu0 0.0
    %418 = vmatpush.msra.mxu0 0.0
    %419 = vmatpush.msra.mxu0 0.0
    %420 = vmatpush.msra.mxu0 0.0
    %421 = vmatpush.msra.mxu0 0.0
    %422 = vmatpush.msra.mxu0 0.0
    %423 = vmatpush.msra.mxu0 0.0
    %424 = vmatpush.msra.mxu0 0.0
    %425 = vmatpush.msra.mxu0 0.0
    %426 = vmatpush.msra.mxu0 0.0
    %427 = vmatpush.msra.mxu0 0.0
    %428 = vmatpush.msra.mxu0 %v411
    %429 = vmatmul.f32.gmra.mxu0 %v406
    %v430 = vpop.f32.mrf.mxu0
    %v431 = vadd.f32 0.0, %v430
    %432 = vmatmul.f32.gmra.mxu0 %v409
    %v433 = vpop.f32.mrf.mxu0
    %v434 = vadd.f32 0.0, %v433
    %435 = vdwg.mxu0
    %v436 = vadd.f32 %v398, %v431
    %v437 = vadd.f32 %v399, %v434
    %s438 = scalar_lea.vmem %s1, 176
    %v439 = vld [vmem:[%s438] sm:$0xff]
    %v440 = vld [vmem:[%s438 + $0x8] sm:$0xff]
    %441 = vrot.lane.b32.xlu0 %v23, 117
    %v442 = vpop.permute.xlu0 %441
    %v444 = vsel %vm32, %v439, 0
    %v447 = vsel %vm32, %v440, 0
    %v449 = vsel %vm39, %v442, 0
    %451 = vmatpush.msra.mxu0 0.0
    %452 = vmatpush.msra.mxu0 0.0
    %453 = vmatpush.msra.mxu0 0.0
    %454 = vmatpush.msra.mxu0 0.0
    %455 = vmatpush.msra.mxu0 0.0
    %456 = vmatpush.msra.mxu0 0.0
    %457 = vmatpush.msra.mxu0 0.0
    %458 = vmatpush.msra.mxu0 0.0
    %459 = vmatpush.msra.mxu0 0.0
    %460 = vmatpush.msra.mxu0 0.0
    %461 = vmatpush.msra.mxu0 0.0
    %462 = vmatpush.msra.mxu0 0.0
    %463 = vmatpush.msra.mxu0 0.0
    %464 = vmatpush.msra.mxu0 0.0
    %465 = vmatpush.msra.mxu0 0.0
    %466 = vmatpush.msra.mxu0 %v449
    %467 = vmatmul.f32.gmra.mxu0 %v444
    %v468 = vpop.f32.mrf.mxu0
    %v469 = vadd.f32 0.0, %v468
    %470 = vmatmul.f32.gmra.mxu0 %v447
    %v471 = vpop.f32.mrf.mxu0
    %v472 = vadd.f32 0.0, %v471
    %473 = vdwg.mxu0
    %v474 = vadd.f32 %v436, %v469
    %v475 = vadd.f32 %v437, %v472
    %s476 = scalar_lea.vmem %s1, 192
    %v477 = vld [vmem:[%s476] sm:$0xff]
    %v478 = vld [vmem:[%s476 + $0x8] sm:$0xff]
    %479 = vrot.lane.b32.xlu0 %v23, 116
    %v480 = vpop.permute.xlu0 %479
    %v482 = vsel %vm32, %v477, 0
    %v485 = vsel %vm32, %v478, 0
    %v487 = vsel %vm39, %v480, 0
    %489 = vmatpush.msra.mxu0 0.0
    %490 = vmatpush.msra.mxu0 0.0
    %491 = vmatpush.msra.mxu0 0.0
    %492 = vmatpush.msra.mxu0 0.0
    %493 = vmatpush.msra.mxu0 0.0
    %494 = vmatpush.msra.mxu0 0.0
    %495 = vmatpush.msra.mxu0 0.0
    %496 = vmatpush.msra.mxu0 0.0
    %497 = vmatpush.msra.mxu0 0.0
    %498 = vmatpush.msra.mxu0 0.0
    %499 = vmatpush.msra.mxu0 0.0
    %500 = vmatpush.msra.mxu0 0.0
    %501 = vmatpush.msra.mxu0 0.0
    %502 = vmatpush.msra.mxu0 0.0
    %503 = vmatpush.msra.mxu0 0.0
    %504 = vmatpush.msra.mxu0 %v487
    %505 = vmatmul.f32.gmra.mxu0 %v482
    %v506 = vpop.f32.mrf.mxu0
    %v507 = vadd.f32 0.0, %v506
    %508 = vmatmul.f32.gmra.mxu0 %v485
    %v509 = vpop.f32.mrf.mxu0
    %v510 = vadd.f32 0.0, %v509
    %511 = vdwg.mxu0
    %v512 = vadd.f32 %v474, %v507
    %v513 = vadd.f32 %v475, %v510
    %s514 = scalar_lea.vmem %s1, 208
    %v515 = vld [vmem:[%s514] sm:$0xff]
    %v516 = vld [vmem:[%s514 + $0x8] sm:$0xff]
    %517 = vrot.lane.b32.xlu0 %v23, 115
    %v518 = vpop.permute.xlu0 %517
    %v520 = vsel %vm32, %v515, 0
    %v523 = vsel %vm32, %v516, 0
    %v525 = vsel %vm39, %v518, 0
    %527 = vmatpush.msra.mxu0 0.0
    %528 = vmatpush.msra.mxu0 0.0
    %529 = vmatpush.msra.mxu0 0.0
    %530 = vmatpush.msra.mxu0 0.0
    %531 = vmatpush.msra.mxu0 0.0
    %532 = vmatpush.msra.mxu0 0.0
    %533 = vmatpush.msra.mxu0 0.0
    %534 = vmatpush.msra.mxu0 0.0
    %535 = vmatpush.msra.mxu0 0.0
    %536 = vmatpush.msra.mxu0 0.0
    %537 = vmatpush.msra.mxu0 0.0
    %538 = vmatpush.msra.mxu0 0.0
    %539 = vmatpush.msra.mxu0 0.0
    %540 = vmatpush.msra.mxu0 0.0
    %541 = vmatpush.msra.mxu0 0.0
    %542 = vmatpush.msra.mxu0 %v525
    %543 = vmatmul.f32.gmra.mxu0 %v520
    %v544 = vpop.f32.mrf.mxu0
    %v545 = vadd.f32 0.0, %v544
    %546 = vmatmul.f32.gmra.mxu0 %v523
    %v547 = vpop.f32.mrf.mxu0
    %v548 = vadd.f32 0.0, %v547
    %549 = vdwg.mxu0
    %v550 = vadd.f32 %v512, %v545
    %v551 = vadd.f32 %v513, %v548
    %s552 = scalar_lea.vmem %s1, 224
    %v553 = vld [vmem:[%s552] sm:$0xff]
    %v554 = vld [vmem:[%s552 + $0x8] sm:$0xff]
    %555 = vrot.lane.b32.xlu0 %v23, 114
    %v556 = vpop.permute.xlu0 %555
    %v558 = vsel %vm32, %v553, 0
    %v561 = vsel %vm32, %v554, 0
    %v563 = vsel %vm39, %v556, 0
    %565 = vmatpush.msra.mxu0 0.0
    %566 = vmatpush.msra.mxu0 0.0
    %567 = vmatpush.msra.mxu0 0.0
    %568 = vmatpush.msra.mxu0 0.0
    %569 = vmatpush.msra.mxu0 0.0
    %570 = vmatpush.msra.mxu0 0.0
    %571 = vmatpush.msra.mxu0 0.0
    %572 = vmatpush.msra.mxu0 0.0
    %573 = vmatpush.msra.mxu0 0.0
    %574 = vmatpush.msra.mxu0 0.0
    %575 = vmatpush.msra.mxu0 0.0
    %576 = vmatpush.msra.mxu0 0.0
    %577 = vmatpush.msra.mxu0 0.0
    %578 = vmatpush.msra.mxu0 0.0
    %579 = vmatpush.msra.mxu0 0.0
    %580 = vmatpush.msra.mxu0 %v563
    %581 = vmatmul.f32.gmra.mxu0 %v558
    %v582 = vpop.f32.mrf.mxu0
    %v583 = vadd.f32 0.0, %v582
    %584 = vmatmul.f32.gmra.mxu0 %v561
    %v585 = vpop.f32.mrf.mxu0
    %v586 = vadd.f32 0.0, %v585
    %587 = vdwg.mxu0
    %v588 = vadd.f32 %v550, %v583
    %v589 = vadd.f32 %v551, %v586
    %s590 = scalar_lea.vmem %s1, 240
    %v591 = vld [vmem:[%s590] sm:$0xff]
    %v592 = vld [vmem:[%s590 + $0x8] sm:$0xff]
    %593 = vrot.lane.b32.xlu0 %v23, 113
    %v594 = vpop.permute.xlu0 %593
    %v596 = vsel %vm32, %v591, 0
    %v599 = vsel %vm32, %v592, 0
    %v601 = vsel %vm39, %v594, 0
    %603 = vmatpush.msra.mxu0 0.0
    %604 = vmatpush.msra.mxu0 0.0
    %605 = vmatpush.msra.mxu0 0.0
    %606 = vmatpush.msra.mxu0 0.0
    %607 = vmatpush.msra.mxu0 0.0
    %608 = vmatpush.msra.mxu0 0.0
    %609 = vmatpush.msra.mxu0 0.0
    %610 = vmatpush.msra.mxu0 0.0
    %611 = vmatpush.msra.mxu0 0.0
    %612 = vmatpush.msra.mxu0 0.0
    %613 = vmatpush.msra.mxu0 0.0
    %614 = vmatpush.msra.mxu0 0.0
    %615 = vmatpush.msra.mxu0 0.0
    %616 = vmatpush.msra.mxu0 0.0
    %617 = vmatpush.msra.mxu0 0.0
    %618 = vmatpush.msra.mxu0 %v601
    %619 = vmatmul.f32.gmra.mxu0 %v596
    %v620 = vpop.f32.mrf.mxu0
    %v621 = vadd.f32 0.0, %v620
    %622 = vmatmul.f32.gmra.mxu0 %v599
    %v623 = vpop.f32.mrf.mxu0
    %v624 = vadd.f32 0.0, %v623
    %625 = vdwg.mxu0
    %v626 = vadd.f32 %v588, %v621
    %v627 = vadd.f32 %v589, %v624
    %629 = vset.pattern.permute.xlu0 0
    %630 = vperm.xlu0 %629, %v21
    %v631 = vpop.permute.xlu0 %630
    %634 = vset.pattern.permute.xlu0 0
    %635 = vperm.xlu0 %634, %v22
    %v636 = vpop.permute.xlu0 %635
    %v638 = vadd.f32 %v626, %v631
    %v639 = vadd.f32 %v627, %v636
    %vm640 = vcmp.gt.f32.partialorder %v638, 0.0
    %vm641 = vcmp.gt.f32.partialorder %v639, 0.0
    %v642 = vmul.f32 %v638, 1.442695
    %v643 = vpow.pop %v642
    %v644 = vmul.f32 %v639, 1.442695
    %v645 = vpow.pop %v644
    %v646 = vsub.f32 %v643, 1.0
    %v647 = vsub.f32 %v645, 1.0
    %v648 = vmul.f32 %v646, 1.6732632
    %v649 = vmul.f32 %v647, 1.6732632
    %v650 = vsel %vm640, %v638, %v648
    %v651 = vsel %vm641, %v639, %v649
    %v652 = vmul.f32 %v650, 1.050701
    %v653 = vmul.f32 %v651, 1.050701
    %vm654 = vcmask 138240
    %655 = vst.msk [vmem:[#allocation2] sm:$0xff] %vm654, %v652
    %656 = vst.msk [vmem:[#allocation2 + $0x8] sm:$0xff] %vm654, %v653
    %s657 = scalar_lea.vmem %s0, 8
    %v658 = vld [vmem:[%s657] sm:$0x1f]
    %v659 = vld [vmem:[%s1] sm:$0xff]
    %v660 = vld [vmem:[%s1 + $0x8] sm:$0xff]
    %v661 = vld [vmem:[%s26] sm:$0xff]
    %v662 = vld [vmem:[%s26 + $0x8] sm:$0xff]
    %664 = vrot.lane.b32.xlu0 %v658, 127
    %v665 = vpop.permute.xlu0 %664
    %v667 = vsel %vm32, %v661, 0
    %v670 = vsel %vm32, %v662, 0
    %v672 = vsel %vm39, %v665, 0
    %674 = vmatpush.msra.mxu0 0.0
    %675 = vmatpush.msra.mxu0 0.0
    %676 = vmatpush.msra.mxu0 0.0
    %677 = vmatpush.msra.mxu0 0.0
    %678 = vmatpush.msra.mxu0 0.0
    %679 = vmatpush.msra.mxu0 0.0
    %680 = vmatpush.msra.mxu0 0.0
    %681 = vmatpush.msra.mxu0 0.0
    %682 = vmatpush.msra.mxu0 0.0
    %683 = vmatpush.msra.mxu0 0.0
    %684 = vmatpush.msra.mxu0 0.0
    %685 = vmatpush.msra.mxu0 0.0
    %686 = vmatpush.msra.mxu0 0.0
    %687 = vmatpush.msra.mxu0 0.0
    %688 = vmatpush.msra.mxu0 0.0
    %689 = vmatpush.msra.mxu0 %v672
    %690 = vmatmul.f32.gmra.mxu0 %v667
    %v691 = vpop.f32.mrf.mxu0
    %v692 = vadd.f32 0.0, %v691
    %693 = vmatmul.f32.gmra.mxu0 %v670
    %v694 = vpop.f32.mrf.mxu0
    %v695 = vadd.f32 0.0, %v694
    %696 = vdwg.mxu0
    %v698 = vsel %vm32, %v659, 0
    %v701 = vsel %vm32, %v660, 0
    %v703 = vsel %vm39, %v658, 0
    %705 = vmatpush.msra.mxu0 0.0
    %706 = vmatpush.msra.mxu0 0.0
    %707 = vmatpush.msra.mxu0 0.0
    %708 = vmatpush.msra.mxu0 0.0
    %709 = vmatpush.msra.mxu0 0.0
    %710 = vmatpush.msra.mxu0 0.0
    %711 = vmatpush.msra.mxu0 0.0
    %712 = vmatpush.msra.mxu0 0.0
    %713 = vmatpush.msra.mxu0 0.0
    %714 = vmatpush.msra.mxu0 0.0
    %715 = vmatpush.msra.mxu0 0.0
    %716 = vmatpush.msra.mxu0 0.0
    %717 = vmatpush.msra.mxu0 0.0
    %718 = vmatpush.msra.mxu0 0.0
    %719 = vmatpush.msra.mxu0 0.0
    %720 = vmatpush.msra.mxu0 %v703
    %721 = vmatmul.f32.gmra.mxu0 %v698
    %v722 = vpop.f32.mrf.mxu0
    %v723 = vadd.f32 %v692, %v722
    %724 = vmatmul.f32.gmra.mxu0 %v701
    %v725 = vpop.f32.mrf.mxu0
    %v726 = vadd.f32 %v695, %v725
    %727 = vdwg.mxu0
    %v728 = vld [vmem:[%s96] sm:$0xff]
    %v729 = vld [vmem:[%s96 + $0x8] sm:$0xff]
    %730 = vrot.lane.b32.xlu0 %v658, 126
    %v731 = vpop.permute.xlu0 %730
    %v733 = vsel %vm32, %v728, 0
    %v736 = vsel %vm32, %v729, 0
    %v738 = vsel %vm39, %v731, 0
    %740 = vmatpush.msra.mxu0 0.0
    %741 = vmatpush.msra.mxu0 0.0
    %742 = vmatpush.msra.mxu0 0.0
    %743 = vmatpush.msra.mxu0 0.0
    %744 = vmatpush.msra.mxu0 0.0
    %745 = vmatpush.msra.mxu0 0.0
    %746 = vmatpush.msra.mxu0 0.0
    %747 = vmatpush.msra.mxu0 0.0
    %748 = vmatpush.msra.mxu0 0.0
    %749 = vmatpush.msra.mxu0 0.0
    %750 = vmatpush.msra.mxu0 0.0
    %751 = vmatpush.msra.mxu0 0.0
    %752 = vmatpush.msra.mxu0 0.0
    %753 = vmatpush.msra.mxu0 0.0
    %754 = vmatpush.msra.mxu0 0.0
    %755 = vmatpush.msra.mxu0 %v738
    %756 = vmatmul.f32.gmra.mxu0 %v733
    %v757 = vpop.f32.mrf.mxu0
    %v758 = vadd.f32 0.0, %v757
    %759 = vmatmul.f32.gmra.mxu0 %v736
    %v760 = vpop.f32.mrf.mxu0
    %v761 = vadd.f32 0.0, %v760
    %762 = vdwg.mxu0
    %v763 = vadd.f32 %v723, %v758
    %v764 = vadd.f32 %v726, %v761
    %v765 = vld [vmem:[%s134] sm:$0xff]
    %v766 = vld [vmem:[%s134 + $0x8] sm:$0xff]
    %767 = vrot.lane.b32.xlu0 %v658, 125
    %v768 = vpop.permute.xlu0 %767
    %v770 = vsel %vm32, %v765, 0
    %v773 = vsel %vm32, %v766, 0
    %v775 = vsel %vm39, %v768, 0
    %777 = vmatpush.msra.mxu0 0.0
    %778 = vmatpush.msra.mxu0 0.0
    %779 = vmatpush.msra.mxu0 0.0
    %780 = vmatpush.msra.mxu0 0.0
    %781 = vmatpush.msra.mxu0 0.0
    %782 = vmatpush.msra.mxu0 0.0
    %783 = vmatpush.msra.mxu0 0.0
    %784 = vmatpush.msra.mxu0 0.0
    %785 = vmatpush.msra.mxu0 0.0
    %786 = vmatpush.msra.mxu0 0.0
    %787 = vmatpush.msra.mxu0 0.0
    %788 = vmatpush.msra.mxu0 0.0
    %789 = vmatpush.msra.mxu0 0.0
    %790 = vmatpush.msra.mxu0 0.0
    %791 = vmatpush.msra.mxu0 0.0
    %792 = vmatpush.msra.mxu0 %v775
    %793 = vmatmul.f32.gmra.mxu0 %v770
    %v794 = vpop.f32.mrf.mxu0
    %v795 = vadd.f32 0.0, %v794
    %796 = vmatmul.f32.gmra.mxu0 %v773
    %v797 = vpop.f32.mrf.mxu0
    %v798 = vadd.f32 0.0, %v797
    %799 = vdwg.mxu0
    %v800 = vadd.f32 %v763, %v795
    %v801 = vadd.f32 %v764, %v798
    %v802 = vld [vmem:[%s172] sm:$0xff]
    %v803 = vld [vmem:[%s172 + $0x8] sm:$0xff]
    %804 = vrot.lane.b32.xlu0 %v658, 124
    %v805 = vpop.permute.xlu0 %804
    %v807 = vsel %vm32, %v802, 0
    %v810 = vsel %vm32, %v803, 0
    %v812 = vsel %vm39, %v805, 0
    %814 = vmatpush.msra.mxu0 0.0
    %815 = vmatpush.msra.mxu0 0.0
    %816 = vmatpush.msra.mxu0 0.0
    %817 = vmatpush.msra.mxu0 0.0
    %818 = vmatpush.msra.mxu0 0.0
    %819 = vmatpush.msra.mxu0 0.0
    %820 = vmatpush.msra.mxu0 0.0
    %821 = vmatpush.msra.mxu0 0.0
    %822 = vmatpush.msra.mxu0 0.0
    %823 = vmatpush.msra.mxu0 0.0
    %824 = vmatpush.msra.mxu0 0.0
    %825 = vmatpush.msra.mxu0 0.0
    %826 = vmatpush.msra.mxu0 0.0
    %827 = vmatpush.msra.mxu0 0.0
    %828 = vmatpush.msra.mxu0 0.0
    %829 = vmatpush.msra.mxu0 %v812
    %830 = vmatmul.f32.gmra.mxu0 %v807
    %v831 = vpop.f32.mrf.mxu0
    %v832 = vadd.f32 0.0, %v831
    %833 = vmatmul.f32.gmra.mxu0 %v810
    %v834 = vpop.f32.mrf.mxu0
    %v835 = vadd.f32 0.0, %v834
    %836 = vdwg.mxu0
    %v837 = vadd.f32 %v800, %v832
    %v838 = vadd.f32 %v801, %v835
    %v839 = vld [vmem:[%s210] sm:$0xff]
    %v840 = vld [vmem:[%s210 + $0x8] sm:$0xff]
    %841 = vrot.lane.b32.xlu0 %v658, 123
    %v842 = vpop.permute.xlu0 %841
    %v844 = vsel %vm32, %v839, 0
    %v847 = vsel %vm32, %v840, 0
    %v849 = vsel %vm39, %v842, 0
    %851 = vmatpush.msra.mxu0 0.0
    %852 = vmatpush.msra.mxu0 0.0
    %853 = vmatpush.msra.mxu0 0.0
    %854 = vmatpush.msra.mxu0 0.0
    %855 = vmatpush.msra.mxu0 0.0
    %856 = vmatpush.msra.mxu0 0.0
    %857 = vmatpush.msra.mxu0 0.0
    %858 = vmatpush.msra.mxu0 0.0
    %859 = vmatpush.msra.mxu0 0.0
    %860 = vmatpush.msra.mxu0 0.0
    %861 = vmatpush.msra.mxu0 0.0
    %862 = vmatpush.msra.mxu0 0.0
    %863 = vmatpush.msra.mxu0 0.0
    %864 = vmatpush.msra.mxu0 0.0
    %865 = vmatpush.msra.mxu0 0.0
    %866 = vmatpush.msra.mxu0 %v849
    %867 = vmatmul.f32.gmra.mxu0 %v844
    %v868 = vpop.f32.mrf.mxu0
    %v869 = vadd.f32 0.0, %v868
    %870 = vmatmul.f32.gmra.mxu0 %v847
    %v871 = vpop.f32.mrf.mxu0
    %v872 = vadd.f32 0.0, %v871
    %873 = vdwg.mxu0
    %v874 = vadd.f32 %v837, %v869
    %v875 = vadd.f32 %v838, %v872
    %v876 = vld [vmem:[%s248] sm:$0xff]
    %v877 = vld [vmem:[%s248 + $0x8] sm:$0xff]
    %878 = vrot.lane.b32.xlu0 %v658, 122
    %v879 = vpop.permute.xlu0 %878
    %v881 = vsel %vm32, %v876, 0
    %v884 = vsel %vm32, %v877, 0
    %v886 = vsel %vm39, %v879, 0
    %888 = vmatpush.msra.mxu0 0.0
    %889 = vmatpush.msra.mxu0 0.0
    %890 = vmatpush.msra.mxu0 0.0
    %891 = vmatpush.msra.mxu0 0.0
    %892 = vmatpush.msra.mxu0 0.0
    %893 = vmatpush.msra.mxu0 0.0
    %894 = vmatpush.msra.mxu0 0.0
    %895 = vmatpush.msra.mxu0 0.0
    %896 = vmatpush.msra.mxu0 0.0
    %897 = vmatpush.msra.mxu0 0.0
    %898 = vmatpush.msra.mxu0 0.0
    %899 = vmatpush.msra.mxu0 0.0
    %900 = vmatpush.msra.mxu0 0.0
    %901 = vmatpush.msra.mxu0 0.0
    %902 = vmatpush.msra.mxu0 0.0
    %903 = vmatpush.msra.mxu0 %v886
    %904 = vmatmul.f32.gmra.mxu0 %v881
    %v905 = vpop.f32.mrf.mxu0
    %v906 = vadd.f32 0.0, %v905
    %907 = vmatmul.f32.gmra.mxu0 %v884
    %v908 = vpop.f32.mrf.mxu0
    %v909 = vadd.f32 0.0, %v908
    %910 = vdwg.mxu0
    %v911 = vadd.f32 %v874, %v906
    %v912 = vadd.f32 %v875, %v909
    %v913 = vld [vmem:[%s286] sm:$0xff]
    %v914 = vld [vmem:[%s286 + $0x8] sm:$0xff]
    %915 = vrot.lane.b32.xlu0 %v658, 121
    %v916 = vpop.permute.xlu0 %915
    %v918 = vsel %vm32, %v913, 0
    %v921 = vsel %vm32, %v914, 0
    %v923 = vsel %vm39, %v916, 0
    %925 = vmatpush.msra.mxu0 0.0
    %926 = vmatpush.msra.mxu0 0.0
    %927 = vmatpush.msra.mxu0 0.0
    %928 = vmatpush.msra.mxu0 0.0
    %929 = vmatpush.msra.mxu0 0.0
    %930 = vmatpush.msra.mxu0 0.0
    %931 = vmatpush.msra.mxu0 0.0
    %932 = vmatpush.msra.mxu0 0.0
    %933 = vmatpush.msra.mxu0 0.0
    %934 = vmatpush.msra.mxu0 0.0
    %935 = vmatpush.msra.mxu0 0.0
    %936 = vmatpush.msra.mxu0 0.0
    %937 = vmatpush.msra.mxu0 0.0
    %938 = vmatpush.msra.mxu0 0.0
    %939 = vmatpush.msra.mxu0 0.0
    %940 = vmatpush.msra.mxu0 %v923
    %941 = vmatmul.f32.gmra.mxu0 %v918
    %v942 = vpop.f32.mrf.mxu0
    %v943 = vadd.f32 0.0, %v942
    %944 = vmatmul.f32.gmra.mxu0 %v921
    %v945 = vpop.f32.mrf.mxu0
    %v946 = vadd.f32 0.0, %v945
    %947 = vdwg.mxu0
    %v948 = vadd.f32 %v911, %v943
    %v949 = vadd.f32 %v912, %v946
    %v950 = vld [vmem:[%s324] sm:$0xff]
    %v951 = vld [vmem:[%s324 + $0x8] sm:$0xff]
    %952 = vrot.lane.b32.xlu0 %v658, 120
    %v953 = vpop.permute.xlu0 %952
    %v955 = vsel %vm32, %v950, 0
    %v958 = vsel %vm32, %v951, 0
    %v960 = vsel %vm39, %v953, 0
    %962 = vmatpush.msra.mxu0 0.0
    %963 = vmatpush.msra.mxu0 0.0
    %964 = vmatpush.msra.mxu0 0.0
    %965 = vmatpush.msra.mxu0 0.0
    %966 = vmatpush.msra.mxu0 0.0
    %967 = vmatpush.msra.mxu0 0.0
    %968 = vmatpush.msra.mxu0 0.0
    %969 = vmatpush.msra.mxu0 0.0
    %970 = vmatpush.msra.mxu0 0.0
    %971 = vmatpush.msra.mxu0 0.0
    %972 = vmatpush.msra.mxu0 0.0
    %973 = vmatpush.msra.mxu0 0.0
    %974 = vmatpush.msra.mxu0 0.0
    %975 = vmatpush.msra.mxu0 0.0
    %976 = vmatpush.msra.mxu0 0.0
    %977 = vmatpush.msra.mxu0 %v960
    %978 = vmatmul.f32.gmra.mxu0 %v955
    %v979 = vpop.f32.mrf.mxu0
    %v980 = vadd.f32 0.0, %v979
    %981 = vmatmul.f32.gmra.mxu0 %v958
    %v982 = vpop.f32.mrf.mxu0
    %v983 = vadd.f32 0.0, %v982
    %984 = vdwg.mxu0
    %v985 = vadd.f32 %v948, %v980
    %v986 = vadd.f32 %v949, %v983
    %v987 = vld [vmem:[%s362] sm:$0xff]
    %v988 = vld [vmem:[%s362 + $0x8] sm:$0xff]
    %989 = vrot.lane.b32.xlu0 %v658, 119
    %v990 = vpop.permute.xlu0 %989
    %v992 = vsel %vm32, %v987, 0
    %v995 = vsel %vm32, %v988, 0
    %v997 = vsel %vm39, %v990, 0
    %999 = vmatpush.msra.mxu0 0.0
    %1000 = vmatpush.msra.mxu0 0.0
    %1001 = vmatpush.msra.mxu0 0.0
    %1002 = vmatpush.msra.mxu0 0.0
    %1003 = vmatpush.msra.mxu0 0.0
    %1004 = vmatpush.msra.mxu0 0.0
    %1005 = vmatpush.msra.mxu0 0.0
    %1006 = vmatpush.msra.mxu0 0.0
    %1007 = vmatpush.msra.mxu0 0.0
    %1008 = vmatpush.msra.mxu0 0.0
    %1009 = vmatpush.msra.mxu0 0.0
    %1010 = vmatpush.msra.mxu0 0.0
    %1011 = vmatpush.msra.mxu0 0.0
    %1012 = vmatpush.msra.mxu0 0.0
    %1013 = vmatpush.msra.mxu0 0.0
    %1014 = vmatpush.msra.mxu0 %v997
    %1015 = vmatmul.f32.gmra.mxu0 %v992
    %v1016 = vpop.f32.mrf.mxu0
    %v1017 = vadd.f32 0.0, %v1016
    %1018 = vmatmul.f32.gmra.mxu0 %v995
    %v1019 = vpop.f32.mrf.mxu0
    %v1020 = vadd.f32 0.0, %v1019
    %1021 = vdwg.mxu0
    %v1022 = vadd.f32 %v985, %v1017
    %v1023 = vadd.f32 %v986, %v1020
    %v1024 = vld [vmem:[%s400] sm:$0xff]
    %v1025 = vld [vmem:[%s400 + $0x8] sm:$0xff]
    %1026 = vrot.lane.b32.xlu0 %v658, 118
    %v1027 = vpop.permute.xlu0 %1026
    %v1029 = vsel %vm32, %v1024, 0
    %v1032 = vsel %vm32, %v1025, 0
    %v1034 = vsel %vm39, %v1027, 0
    %1036 = vmatpush.msra.mxu0 0.0
    %1037 = vmatpush.msra.mxu0 0.0
    %1038 = vmatpush.msra.mxu0 0.0
    %1039 = vmatpush.msra.mxu0 0.0
    %1040 = vmatpush.msra.mxu0 0.0
    %1041 = vmatpush.msra.mxu0 0.0
    %1042 = vmatpush.msra.mxu0 0.0
    %1043 = vmatpush.msra.mxu0 0.0
    %1044 = vmatpush.msra.mxu0 0.0
    %1045 = vmatpush.msra.mxu0 0.0
    %1046 = vmatpush.msra.mxu0 0.0
    %1047 = vmatpush.msra.mxu0 0.0
    %1048 = vmatpush.msra.mxu0 0.0
    %1049 = vmatpush.msra.mxu0 0.0
    %1050 = vmatpush.msra.mxu0 0.0
    %1051 = vmatpush.msra.mxu0 %v1034
    %1052 = vmatmul.f32.gmra.mxu0 %v1029
    %v1053 = vpop.f32.mrf.mxu0
    %v1054 = vadd.f32 0.0, %v1053
    %1055 = vmatmul.f32.gmra.mxu0 %v1032
    %v1056 = vpop.f32.mrf.mxu0
    %v1057 = vadd.f32 0.0, %v1056
    %1058 = vdwg.mxu0
    %v1059 = vadd.f32 %v1022, %v1054
    %v1060 = vadd.f32 %v1023, %v1057
    %v1061 = vld [vmem:[%s438] sm:$0xff]
    %v1062 = vld [vmem:[%s438 + $0x8] sm:$0xff]
    %1063 = vrot.lane.b32.xlu0 %v658, 117
    %v1064 = vpop.permute.xlu0 %1063
    %v1066 = vsel %vm32, %v1061, 0
    %v1069 = vsel %vm32, %v1062, 0
    %v1071 = vsel %vm39, %v1064, 0
    %1073 = vmatpush.msra.mxu0 0.0
    %1074 = vmatpush.msra.mxu0 0.0
    %1075 = vmatpush.msra.mxu0 0.0
    %1076 = vmatpush.msra.mxu0 0.0
    %1077 = vmatpush.msra.mxu0 0.0
    %1078 = vmatpush.msra.mxu0 0.0
    %1079 = vmatpush.msra.mxu0 0.0
    %1080 = vmatpush.msra.mxu0 0.0
    %1081 = vmatpush.msra.mxu0 0.0
    %1082 = vmatpush.msra.mxu0 0.0
    %1083 = vmatpush.msra.mxu0 0.0
    %1084 = vmatpush.msra.mxu0 0.0
    %1085 = vmatpush.msra.mxu0 0.0
    %1086 = vmatpush.msra.mxu0 0.0
    %1087 = vmatpush.msra.mxu0 0.0
    %1088 = vmatpush.msra.mxu0 %v1071
    %1089 = vmatmul.f32.gmra.mxu0 %v1066
    %v1090 = vpop.f32.mrf.mxu0
    %v1091 = vadd.f32 0.0, %v1090
    %1092 = vmatmul.f32.gmra.mxu0 %v1069
    %v1093 = vpop.f32.mrf.mxu0
    %v1094 = vadd.f32 0.0, %v1093
    %1095 = vdwg.mxu0
    %v1096 = vadd.f32 %v1059, %v1091
    %v1097 = vadd.f32 %v1060, %v1094
    %v1098 = vld [vmem:[%s476] sm:$0xff]
    %v1099 = vld [vmem:[%s476 + $0x8] sm:$0xff]
    %1100 = vrot.lane.b32.xlu0 %v658, 116
    %v1101 = vpop.permute.xlu0 %1100
    %v1103 = vsel %vm32, %v1098, 0
    %v1106 = vsel %vm32, %v1099, 0
    %v1108 = vsel %vm39, %v1101, 0
    %1110 = vmatpush.msra.mxu0 0.0
    %1111 = vmatpush.msra.mxu0 0.0
    %1112 = vmatpush.msra.mxu0 0.0
    %1113 = vmatpush.msra.mxu0 0.0
    %1114 = vmatpush.msra.mxu0 0.0
    %1115 = vmatpush.msra.mxu0 0.0
    %1116 = vmatpush.msra.mxu0 0.0
    %1117 = vmatpush.msra.mxu0 0.0
    %1118 = vmatpush.msra.mxu0 0.0
    %1119 = vmatpush.msra.mxu0 0.0
    %1120 = vmatpush.msra.mxu0 0.0
    %1121 = vmatpush.msra.mxu0 0.0
    %1122 = vmatpush.msra.mxu0 0.0
    %1123 = vmatpush.msra.mxu0 0.0
    %1124 = vmatpush.msra.mxu0 0.0
    %1125 = vmatpush.msra.mxu0 %v1108
    %1126 = vmatmul.f32.gmra.mxu0 %v1103
    %v1127 = vpop.f32.mrf.mxu0
    %v1128 = vadd.f32 0.0, %v1127
    %1129 = vmatmul.f32.gmra.mxu0 %v1106
    %v1130 = vpop.f32.mrf.mxu0
    %v1131 = vadd.f32 0.0, %v1130
    %1132 = vdwg.mxu0
    %v1133 = vadd.f32 %v1096, %v1128
    %v1134 = vadd.f32 %v1097, %v1131
    %v1135 = vld [vmem:[%s514] sm:$0xff]
    %v1136 = vld [vmem:[%s514 + $0x8] sm:$0xff]
    %1137 = vrot.lane.b32.xlu0 %v658, 115
    %v1138 = vpop.permute.xlu0 %1137
    %v1140 = vsel %vm32, %v1135, 0
    %v1143 = vsel %vm32, %v1136, 0
    %v1145 = vsel %vm39, %v1138, 0
    %1147 = vmatpush.msra.mxu0 0.0
    %1148 = vmatpush.msra.mxu0 0.0
    %1149 = vmatpush.msra.mxu0 0.0
    %1150 = vmatpush.msra.mxu0 0.0
    %1151 = vmatpush.msra.mxu0 0.0
    %1152 = vmatpush.msra.mxu0 0.0
    %1153 = vmatpush.msra.mxu0 0.0
    %1154 = vmatpush.msra.mxu0 0.0
    %1155 = vmatpush.msra.mxu0 0.0
    %1156 = vmatpush.msra.mxu0 0.0
    %1157 = vmatpush.msra.mxu0 0.0
    %1158 = vmatpush.msra.mxu0 0.0
    %1159 = vmatpush.msra.mxu0 0.0
    %1160 = vmatpush.msra.mxu0 0.0
    %1161 = vmatpush.msra.mxu0 0.0
    %1162 = vmatpush.msra.mxu0 %v1145
    %1163 = vmatmul.f32.gmra.mxu0 %v1140
    %v1164 = vpop.f32.mrf.mxu0
    %v1165 = vadd.f32 0.0, %v1164
    %1166 = vmatmul.f32.gmra.mxu0 %v1143
    %v1167 = vpop.f32.mrf.mxu0
    %v1168 = vadd.f32 0.0, %v1167
    %1169 = vdwg.mxu0
    %v1170 = vadd.f32 %v1133, %v1165
    %v1171 = vadd.f32 %v1134, %v1168
    %v1172 = vld [vmem:[%s552] sm:$0xff]
    %v1173 = vld [vmem:[%s552 + $0x8] sm:$0xff]
    %1174 = vrot.lane.b32.xlu0 %v658, 114
    %v1175 = vpop.permute.xlu0 %1174
    %v1177 = vsel %vm32, %v1172, 0
    %v1180 = vsel %vm32, %v1173, 0
    %v1182 = vsel %vm39, %v1175, 0
    %1184 = vmatpush.msra.mxu0 0.0
    %1185 = vmatpush.msra.mxu0 0.0
    %1186 = vmatpush.msra.mxu0 0.0
    %1187 = vmatpush.msra.mxu0 0.0
    %1188 = vmatpush.msra.mxu0 0.0
    %1189 = vmatpush.msra.mxu0 0.0
    %1190 = vmatpush.msra.mxu0 0.0
    %1191 = vmatpush.msra.mxu0 0.0
    %1192 = vmatpush.msra.mxu0 0.0
    %1193 = vmatpush.msra.mxu0 0.0
    %1194 = vmatpush.msra.mxu0 0.0
    %1195 = vmatpush.msra.mxu0 0.0
    %1196 = vmatpush.msra.mxu0 0.0
    %1197 = vmatpush.msra.mxu0 0.0
    %1198 = vmatpush.msra.mxu0 0.0
    %1199 = vmatpush.msra.mxu0 %v1182
    %1200 = vmatmul.f32.gmra.mxu0 %v1177
    %v1201 = vpop.f32.mrf.mxu0
    %v1202 = vadd.f32 0.0, %v1201
    %1203 = vmatmul.f32.gmra.mxu0 %v1180
    %v1204 = vpop.f32.mrf.mxu0
    %v1205 = vadd.f32 0.0, %v1204
    %1206 = vdwg.mxu0
    %v1207 = vadd.f32 %v1170, %v1202
    %v1208 = vadd.f32 %v1171, %v1205
    %v1209 = vld [vmem:[%s590] sm:$0xff]
    %v1210 = vld [vmem:[%s590 + $0x8] sm:$0xff]
    %1211 = vrot.lane.b32.xlu0 %v658, 113
    %v1212 = vpop.permute.xlu0 %1211
    %v1214 = vsel %vm32, %v1209, 0
    %v1217 = vsel %vm32, %v1210, 0
    %v1219 = vsel %vm39, %v1212, 0
    %1221 = vmatpush.msra.mxu0 0.0
    %1222 = vmatpush.msra.mxu0 0.0
    %1223 = vmatpush.msra.mxu0 0.0
    %1224 = vmatpush.msra.mxu0 0.0
    %1225 = vmatpush.msra.mxu0 0.0
    %1226 = vmatpush.msra.mxu0 0.0
    %1227 = vmatpush.msra.mxu0 0.0
    %1228 = vmatpush.msra.mxu0 0.0
    %1229 = vmatpush.msra.mxu0 0.0
    %1230 = vmatpush.msra.mxu0 0.0
    %1231 = vmatpush.msra.mxu0 0.0
    %1232 = vmatpush.msra.mxu0 0.0
    %1233 = vmatpush.msra.mxu0 0.0
    %1234 = vmatpush.msra.mxu0 0.0
    %1235 = vmatpush.msra.mxu0 0.0
    %1236 = vmatpush.msra.mxu0 %v1219
    %1237 = vmatmul.f32.gmra.mxu0 %v1214
    %v1238 = vpop.f32.mrf.mxu0
    %v1239 = vadd.f32 0.0, %v1238
    %1240 = vmatmul.f32.gmra.mxu0 %v1217
    %v1241 = vpop.f32.mrf.mxu0
    %v1242 = vadd.f32 0.0, %v1241
    %1243 = vdwg.mxu0
    %v1244 = vadd.f32 %v1207, %v1239
    %v1245 = vadd.f32 %v1208, %v1242
    %v1246 = vadd.f32 %v1244, %v631
    %v1247 = vadd.f32 %v1245, %v636
    %vm1248 = vcmp.gt.f32.partialorder %v1246, 0.0
    %vm1249 = vcmp.gt.f32.partialorder %v1247, 0.0
    %v1250 = vmul.f32 %v1246, 1.442695
    %v1251 = vpow.pop %v1250
    %v1252 = vmul.f32 %v1247, 1.442695
    %v1253 = vpow.pop %v1252
    %v1254 = vsub.f32 %v1251, 1.0
    %v1255 = vsub.f32 %v1253, 1.0
    %v1256 = vmul.f32 %v1254, 1.6732632
    %v1257 = vmul.f32 %v1255, 1.6732632
    %v1258 = vsel %vm1248, %v1246, %v1256
    %v1259 = vsel %vm1249, %v1247, %v1257
    %v1260 = vmul.f32 %v1258, 1.050701
    %v1261 = vmul.f32 %v1259, 1.050701
    %v1263 = vsel %vm654, %v1260, 0
    %v1266 = vsel %vm654, %v1261, 0
    %1268 = vmatpush.xpose.msra.mxu0 0.0
    %1269 = vmatpush.xpose.msra.mxu0 0.0
    %1270 = vmatpush.xpose.msra.mxu0 0.0
    %1271 = vmatpush.xpose.msra.mxu0 0.0
    %1272 = vmatpush.xpose.msra.mxu0 0.0
    %1273 = vmatpush.xpose.msra.mxu0 0.0
    %1274 = vmatpush.xpose.msra.mxu0 0.0
    %1275 = vmatpush.xpose.msra.mxu0 0.0
    %1276 = vmatpush.xpose.msra.mxu0 0.0
    %1277 = vmatpush.xpose.msra.mxu0 0.0
    %1278 = vmatpush.xpose.msra.mxu0 0.0
    %1279 = vmatpush.xpose.msra.mxu0 0.0
    %1280 = vmatpush.xpose.msra.mxu0 0.0
    %1281 = vmatpush.xpose.msra.mxu0 0.0
    %1282 = vmatpush.xpose.msra.mxu0 %v1266
    %1283 = vmatpush.xpose.msra.mxu0 %v1263
    %1284 = vmatmul.f32.gmra.mxu0 %v1263
    %v1285 = vpop.f32.mrf.mxu0
    %v1286 = vadd.f32 0.0, %v1285
    %1287 = vmatmul.f32.gmra.mxu0 %v1266
    %v1288 = vpop.f32.mrf.mxu0
    %v1289 = vadd.f32 0.0, %v1288
    %1290 = vdwg.mxu0
    %v1291 = vmul.f32 %v1286, 0.0625
    %v1292 = vmul.f32 %v1289, 0.0625
    %vm1293 = vcmask 130048
    %1294 = vst.msk [vmem:[#allocation4] sm:$0xff] %vm1293, %v1291
    %1295 = vst.msk [vmem:[#allocation4 + $0x8] sm:$0xff] %vm1293, %v1292
    %s1296 = scalar_lea.vmem %s0, 16
    %v1297 = vld [vmem:[%s1296] sm:$0x1f]
    %v1298 = vld [vmem:[%s1] sm:$0xff]
    %v1299 = vld [vmem:[%s1 + $0x8] sm:$0xff]
    %v1300 = vld [vmem:[%s26] sm:$0xff]
    %v1301 = vld [vmem:[%s26 + $0x8] sm:$0xff]
    %1303 = vrot.lane.b32.xlu0 %v1297, 127
    %v1304 = vpop.permute.xlu0 %1303
    %v1306 = vsel %vm32, %v1300, 0
    %v1309 = vsel %vm32, %v1301, 0
    %v1311 = vsel %vm39, %v1304, 0
    %1313 = vmatpush.msra.mxu0 0.0
    %1314 = vmatpush.msra.mxu0 0.0
    %1315 = vmatpush.msra.mxu0 0.0
    %1316 = vmatpush.msra.mxu0 0.0
    %1317 = vmatpush.msra.mxu0 0.0
    %1318 = vmatpush.msra.mxu0 0.0
    %1319 = vmatpush.msra.mxu0 0.0
    %1320 = vmatpush.msra.mxu0 0.0
    %1321 = vmatpush.msra.mxu0 0.0
    %1322 = vmatpush.msra.mxu0 0.0
    %1323 = vmatpush.msra.mxu0 0.0
    %1324 = vmatpush.msra.mxu0 0.0
    %1325 = vmatpush.msra.mxu0 0.0
    %1326 = vmatpush.msra.mxu0 0.0
    %1327 = vmatpush.msra.mxu0 0.0
    %1328 = vmatpush.msra.mxu0 %v1311
    %1329 = vmatmul.f32.gmra.mxu0 %v1306
    %v1330 = vpop.f32.mrf.mxu0
    %v1331 = vadd.f32 0.0, %v1330
    %1332 = vmatmul.f32.gmra.mxu0 %v1309
    %v1333 = vpop.f32.mrf.mxu0
    %v1334 = vadd.f32 0.0, %v1333
    %1335 = vdwg.mxu0
    %v1337 = vsel %vm32, %v1298, 0
    %v1340 = vsel %vm32, %v1299, 0
    %v1342 = vsel %vm39, %v1297, 0
    %1344 = vmatpush.msra.mxu0 0.0
    %1345 = vmatpush.msra.mxu0 0.0
    %1346 = vmatpush.msra.mxu0 0.0
    %1347 = vmatpush.msra.mxu0 0.0
    %1348 = vmatpush.msra.mxu0 0.0
    %1349 = vmatpush.msra.mxu0 0.0
    %1350 = vmatpush.msra.mxu0 0.0
    %1351 = vmatpush.msra.mxu0 0.0
    %1352 = vmatpush.msra.mxu0 0.0
    %1353 = vmatpush.msra.mxu0 0.0
    %1354 = vmatpush.msra.mxu0 0.0
    %1355 = vmatpush.msra.mxu0 0.0
    %1356 = vmatpush.msra.mxu0 0.0
    %1357 = vmatpush.msra.mxu0 0.0
    %1358 = vmatpush.msra.mxu0 0.0
    %1359 = vmatpush.msra.mxu0 %v1342
    %1360 = vmatmul.f32.gmra.mxu0 %v1337
    %v1361 = vpop.f32.mrf.mxu0
    %v1362 = vadd.f32 %v1331, %v1361
    %1363 = vmatmul.f32.gmra.mxu0 %v1340
    %v1364 = vpop.f32.mrf.mxu0
    %v1365 = vadd.f32 %v1334, %v1364
    %1366 = vdwg.mxu0
    %v1367 = vld [vmem:[%s96] sm:$0xff]
    %v1368 = vld [vmem:[%s96 + $0x8] sm:$0xff]
    %1369 = vrot.lane.b32.xlu0 %v1297, 126
    %v1370 = vpop.permute.xlu0 %1369
    %v1372 = vsel %vm32, %v1367, 0
    %v1375 = vsel %vm32, %v1368, 0
    %v1377 = vsel %vm39, %v1370, 0
    %1379 = vmatpush.msra.mxu0 0.0
    %1380 = vmatpush.msra.mxu0 0.0
    %1381 = vmatpush.msra.mxu0 0.0
    %1382 = vmatpush.msra.mxu0 0.0
    %1383 = vmatpush.msra.mxu0 0.0
    %1384 = vmatpush.msra.mxu0 0.0
    %1385 = vmatpush.msra.mxu0 0.0
    %1386 = vmatpush.msra.mxu0 0.0
    %1387 = vmatpush.msra.mxu0 0.0
    %1388 = vmatpush.msra.mxu0 0.0
    %1389 = vmatpush.msra.mxu0 0.0
    %1390 = vmatpush.msra.mxu0 0.0
    %1391 = vmatpush.msra.mxu0 0.0
    %1392 = vmatpush.msra.mxu0 0.0
    %1393 = vmatpush.msra.mxu0 0.0
    %1394 = vmatpush.msra.mxu0 %v1377
    %1395 = vmatmul.f32.gmra.mxu0 %v1372
    %v1396 = vpop.f32.mrf.mxu0
    %v1397 = vadd.f32 0.0, %v1396
    %1398 = vmatmul.f32.gmra.mxu0 %v1375
    %v1399 = vpop.f32.mrf.mxu0
    %v1400 = vadd.f32 0.0, %v1399
    %1401 = vdwg.mxu0
    %v1402 = vadd.f32 %v1362, %v1397
    %v1403 = vadd.f32 %v1365, %v1400
    %v1404 = vld [vmem:[%s134] sm:$0xff]
    %v1405 = vld [vmem:[%s134 + $0x8] sm:$0xff]
    %1406 = vrot.lane.b32.xlu0 %v1297, 125
    %v1407 = vpop.permute.xlu0 %1406
    %v1409 = vsel %vm32, %v1404, 0
    %v1412 = vsel %vm32, %v1405, 0
    %v1414 = vsel %vm39, %v1407, 0
    %1416 = vmatpush.msra.mxu0 0.0
    %1417 = vmatpush.msra.mxu0 0.0
    %1418 = vmatpush.msra.mxu0 0.0
    %1419 = vmatpush.msra.mxu0 0.0
    %1420 = vmatpush.msra.mxu0 0.0
    %1421 = vmatpush.msra.mxu0 0.0
    %1422 = vmatpush.msra.mxu0 0.0
    %1423 = vmatpush.msra.mxu0 0.0
    %1424 = vmatpush.msra.mxu0 0.0
    %1425 = vmatpush.msra.mxu0 0.0
    %1426 = vmatpush.msra.mxu0 0.0
    %1427 = vmatpush.msra.mxu0 0.0
    %1428 = vmatpush.msra.mxu0 0.0
    %1429 = vmatpush.msra.mxu0 0.0
    %1430 = vmatpush.msra.mxu0 0.0
    %1431 = vmatpush.msra.mxu0 %v1414
    %1432 = vmatmul.f32.gmra.mxu0 %v1409
    %v1433 = vpop.f32.mrf.mxu0
    %v1434 = vadd.f32 0.0, %v1433
    %1435 = vmatmul.f32.gmra.mxu0 %v1412
    %v1436 = vpop.f32.mrf.mxu0
    %v1437 = vadd.f32 0.0, %v1436
    %1438 = vdwg.mxu0
    %v1439 = vadd.f32 %v1402, %v1434
    %v1440 = vadd.f32 %v1403, %v1437
    %v1441 = vld [vmem:[%s172] sm:$0xff]
    %v1442 = vld [vmem:[%s172 + $0x8] sm:$0xff]
    %1443 = vrot.lane.b32.xlu0 %v1297, 124
    %v1444 = vpop.permute.xlu0 %1443
    %v1446 = vsel %vm32, %v1441, 0
    %v1449 = vsel %vm32, %v1442, 0
    %v1451 = vsel %vm39, %v1444, 0
    %1453 = vmatpush.msra.mxu0 0.0
    %1454 = vmatpush.msra.mxu0 0.0
    %1455 = vmatpush.msra.mxu0 0.0
    %1456 = vmatpush.msra.mxu0 0.0
    %1457 = vmatpush.msra.mxu0 0.0
    %1458 = vmatpush.msra.mxu0 0.0
    %1459 = vmatpush.msra.mxu0 0.0
    %1460 = vmatpush.msra.mxu0 0.0
    %1461 = vmatpush.msra.mxu0 0.0
    %1462 = vmatpush.msra.mxu0 0.0
    %1463 = vmatpush.msra.mxu0 0.0
    %1464 = vmatpush.msra.mxu0 0.0
    %1465 = vmatpush.msra.mxu0 0.0
    %1466 = vmatpush.msra.mxu0 0.0
    %1467 = vmatpush.msra.mxu0 0.0
    %1468 = vmatpush.msra.mxu0 %v1451
    %1469 = vmatmul.f32.gmra.mxu0 %v1446
    %v1470 = vpop.f32.mrf.mxu0
    %v1471 = vadd.f32 0.0, %v1470
    %1472 = vmatmul.f32.gmra.mxu0 %v1449
    %v1473 = vpop.f32.mrf.mxu0
    %v1474 = vadd.f32 0.0, %v1473
    %1475 = vdwg.mxu0
    %v1476 = vadd.f32 %v1439, %v1471
    %v1477 = vadd.f32 %v1440, %v1474
    %v1478 = vld [vmem:[%s210] sm:$0xff]
    %v1479 = vld [vmem:[%s210 + $0x8] sm:$0xff]
    %1480 = vrot.lane.b32.xlu0 %v1297, 123
    %v1481 = vpop.permute.xlu0 %1480
    %v1483 = vsel %vm32, %v1478, 0
    %v1486 = vsel %vm32, %v1479, 0
    %v1488 = vsel %vm39, %v1481, 0
    %1490 = vmatpush.msra.mxu0 0.0
    %1491 = vmatpush.msra.mxu0 0.0
    %1492 = vmatpush.msra.mxu0 0.0
    %1493 = vmatpush.msra.mxu0 0.0
    %1494 = vmatpush.msra.mxu0 0.0
    %1495 = vmatpush.msra.mxu0 0.0
    %1496 = vmatpush.msra.mxu0 0.0
    %1497 = vmatpush.msra.mxu0 0.0
    %1498 = vmatpush.msra.mxu0 0.0
    %1499 = vmatpush.msra.mxu0 0.0
    %1500 = vmatpush.msra.mxu0 0.0
    %1501 = vmatpush.msra.mxu0 0.0
    %1502 = vmatpush.msra.mxu0 0.0
    %1503 = vmatpush.msra.mxu0 0.0
    %1504 = vmatpush.msra.mxu0 0.0
    %1505 = vmatpush.msra.mxu0 %v1488
    %1506 = vmatmul.f32.gmra.mxu0 %v1483
    %v1507 = vpop.f32.mrf.mxu0
    %v1508 = vadd.f32 0.0, %v1507
    %1509 = vmatmul.f32.gmra.mxu0 %v1486
    %v1510 = vpop.f32.mrf.mxu0
    %v1511 = vadd.f32 0.0, %v1510
    %1512 = vdwg.mxu0
    %v1513 = vadd.f32 %v1476, %v1508
    %v1514 = vadd.f32 %v1477, %v1511
    %v1515 = vld [vmem:[%s248] sm:$0xff]
    %v1516 = vld [vmem:[%s248 + $0x8] sm:$0xff]
    %1517 = vrot.lane.b32.xlu0 %v1297, 122
    %v1518 = vpop.permute.xlu0 %1517
    %v1520 = vsel %vm32, %v1515, 0
    %v1523 = vsel %vm32, %v1516, 0
    %v1525 = vsel %vm39, %v1518, 0
    %1527 = vmatpush.msra.mxu0 0.0
    %1528 = vmatpush.msra.mxu0 0.0
    %1529 = vmatpush.msra.mxu0 0.0
    %1530 = vmatpush.msra.mxu0 0.0
    %1531 = vmatpush.msra.mxu0 0.0
    %1532 = vmatpush.msra.mxu0 0.0
    %1533 = vmatpush.msra.mxu0 0.0
    %1534 = vmatpush.msra.mxu0 0.0
    %1535 = vmatpush.msra.mxu0 0.0
    %1536 = vmatpush.msra.mxu0 0.0
    %1537 = vmatpush.msra.mxu0 0.0
    %1538 = vmatpush.msra.mxu0 0.0
    %1539 = vmatpush.msra.mxu0 0.0
    %1540 = vmatpush.msra.mxu0 0.0
    %1541 = vmatpush.msra.mxu0 0.0
    %1542 = vmatpush.msra.mxu0 %v1525
    %1543 = vmatmul.f32.gmra.mxu0 %v1520
    %v1544 = vpop.f32.mrf.mxu0
    %v1545 = vadd.f32 0.0, %v1544
    %1546 = vmatmul.f32.gmra.mxu0 %v1523
    %v1547 = vpop.f32.mrf.mxu0
    %v1548 = vadd.f32 0.0, %v1547
    %1549 = vdwg.mxu0
    %v1550 = vadd.f32 %v1513, %v1545
    %v1551 = vadd.f32 %v1514, %v1548
    %v1552 = vld [vmem:[%s286] sm:$0xff]
    %v1553 = vld [vmem:[%s286 + $0x8] sm:$0xff]
    %1554 = vrot.lane.b32.xlu0 %v1297, 121
    %v1555 = vpop.permute.xlu0 %1554
    %v1557 = vsel %vm32, %v1552, 0
    %v1560 = vsel %vm32, %v1553, 0
    %v1562 = vsel %vm39, %v1555, 0
    %1564 = vmatpush.msra.mxu0 0.0
    %1565 = vmatpush.msra.mxu0 0.0
    %1566 = vmatpush.msra.mxu0 0.0
    %1567 = vmatpush.msra.mxu0 0.0
    %1568 = vmatpush.msra.mxu0 0.0
    %1569 = vmatpush.msra.mxu0 0.0
    %1570 = vmatpush.msra.mxu0 0.0
    %1571 = vmatpush.msra.mxu0 0.0
    %1572 = vmatpush.msra.mxu0 0.0
    %1573 = vmatpush.msra.mxu0 0.0
    %1574 = vmatpush.msra.mxu0 0.0
    %1575 = vmatpush.msra.mxu0 0.0
    %1576 = vmatpush.msra.mxu0 0.0
    %1577 = vmatpush.msra.mxu0 0.0
    %1578 = vmatpush.msra.mxu0 0.0
    %1579 = vmatpush.msra.mxu0 %v1562
    %1580 = vmatmul.f32.gmra.mxu0 %v1557
    %v1581 = vpop.f32.mrf.mxu0
    %v1582 = vadd.f32 0.0, %v1581
    %1583 = vmatmul.f32.gmra.mxu0 %v1560
    %v1584 = vpop.f32.mrf.mxu0
    %v1585 = vadd.f32 0.0, %v1584
    %1586 = vdwg.mxu0
    %v1587 = vadd.f32 %v1550, %v1582
    %v1588 = vadd.f32 %v1551, %v1585
    %v1589 = vld [vmem:[%s324] sm:$0xff]
    %v1590 = vld [vmem:[%s324 + $0x8] sm:$0xff]
    %1591 = vrot.lane.b32.xlu0 %v1297, 120
    %v1592 = vpop.permute.xlu0 %1591
    %v1594 = vsel %vm32, %v1589, 0
    %v1597 = vsel %vm32, %v1590, 0
    %v1599 = vsel %vm39, %v1592, 0
    %1601 = vmatpush.msra.mxu0 0.0
    %1602 = vmatpush.msra.mxu0 0.0
    %1603 = vmatpush.msra.mxu0 0.0
    %1604 = vmatpush.msra.mxu0 0.0
    %1605 = vmatpush.msra.mxu0 0.0
    %1606 = vmatpush.msra.mxu0 0.0
    %1607 = vmatpush.msra.mxu0 0.0
    %1608 = vmatpush.msra.mxu0 0.0
    %1609 = vmatpush.msra.mxu0 0.0
    %1610 = vmatpush.msra.mxu0 0.0
    %1611 = vmatpush.msra.mxu0 0.0
    %1612 = vmatpush.msra.mxu0 0.0
    %1613 = vmatpush.msra.mxu0 0.0
    %1614 = vmatpush.msra.mxu0 0.0
    %1615 = vmatpush.msra.mxu0 0.0
    %1616 = vmatpush.msra.mxu0 %v1599
    %1617 = vmatmul.f32.gmra.mxu0 %v1594
    %v1618 = vpop.f32.mrf.mxu0
    %v1619 = vadd.f32 0.0, %v1618
    %1620 = vmatmul.f32.gmra.mxu0 %v1597
    %v1621 = vpop.f32.mrf.mxu0
    %v1622 = vadd.f32 0.0, %v1621
    %1623 = vdwg.mxu0
    %v1624 = vadd.f32 %v1587, %v1619
    %v1625 = vadd.f32 %v1588, %v1622
    %v1626 = vld [vmem:[%s362] sm:$0xff]
    %v1627 = vld [vmem:[%s362 + $0x8] sm:$0xff]
    %1628 = vrot.lane.b32.xlu0 %v1297, 119
    %v1629 = vpop.permute.xlu0 %1628
    %v1631 = vsel %vm32, %v1626, 0
    %v1634 = vsel %vm32, %v1627, 0
    %v1636 = vsel %vm39, %v1629, 0
    %1638 = vmatpush.msra.mxu0 0.0
    %1639 = vmatpush.msra.mxu0 0.0
    %1640 = vmatpush.msra.mxu0 0.0
    %1641 = vmatpush.msra.mxu0 0.0
    %1642 = vmatpush.msra.mxu0 0.0
    %1643 = vmatpush.msra.mxu0 0.0
    %1644 = vmatpush.msra.mxu0 0.0
    %1645 = vmatpush.msra.mxu0 0.0
    %1646 = vmatpush.msra.mxu0 0.0
    %1647 = vmatpush.msra.mxu0 0.0
    %1648 = vmatpush.msra.mxu0 0.0
    %1649 = vmatpush.msra.mxu0 0.0
    %1650 = vmatpush.msra.mxu0 0.0
    %1651 = vmatpush.msra.mxu0 0.0
    %1652 = vmatpush.msra.mxu0 0.0
    %1653 = vmatpush.msra.mxu0 %v1636
    %1654 = vmatmul.f32.gmra.mxu0 %v1631
    %v1655 = vpop.f32.mrf.mxu0
    %v1656 = vadd.f32 0.0, %v1655
    %1657 = vmatmul.f32.gmra.mxu0 %v1634
    %v1658 = vpop.f32.mrf.mxu0
    %v1659 = vadd.f32 0.0, %v1658
    %1660 = vdwg.mxu0
    %v1661 = vadd.f32 %v1624, %v1656
    %v1662 = vadd.f32 %v1625, %v1659
    %v1663 = vld [vmem:[%s400] sm:$0xff]
    %v1664 = vld [vmem:[%s400 + $0x8] sm:$0xff]
    %1665 = vrot.lane.b32.xlu0 %v1297, 118
    %v1666 = vpop.permute.xlu0 %1665
    %v1668 = vsel %vm32, %v1663, 0
    %v1671 = vsel %vm32, %v1664, 0
    %v1673 = vsel %vm39, %v1666, 0
    %1675 = vmatpush.msra.mxu0 0.0
    %1676 = vmatpush.msra.mxu0 0.0
    %1677 = vmatpush.msra.mxu0 0.0
    %1678 = vmatpush.msra.mxu0 0.0
    %1679 = vmatpush.msra.mxu0 0.0
    %1680 = vmatpush.msra.mxu0 0.0
    %1681 = vmatpush.msra.mxu0 0.0
    %1682 = vmatpush.msra.mxu0 0.0
    %1683 = vmatpush.msra.mxu0 0.0
    %1684 = vmatpush.msra.mxu0 0.0
    %1685 = vmatpush.msra.mxu0 0.0
    %1686 = vmatpush.msra.mxu0 0.0
    %1687 = vmatpush.msra.mxu0 0.0
    %1688 = vmatpush.msra.mxu0 0.0
    %1689 = vmatpush.msra.mxu0 0.0
    %1690 = vmatpush.msra.mxu0 %v1673
    %1691 = vmatmul.f32.gmra.mxu0 %v1668
    %v1692 = vpop.f32.mrf.mxu0
    %v1693 = vadd.f32 0.0, %v1692
    %1694 = vmatmul.f32.gmra.mxu0 %v1671
    %v1695 = vpop.f32.mrf.mxu0
    %v1696 = vadd.f32 0.0, %v1695
    %1697 = vdwg.mxu0
    %v1698 = vadd.f32 %v1661, %v1693
    %v1699 = vadd.f32 %v1662, %v1696
    %v1700 = vld [vmem:[%s438] sm:$0xff]
    %v1701 = vld [vmem:[%s438 + $0x8] sm:$0xff]
    %1702 = vrot.lane.b32.xlu0 %v1297, 117
    %v1703 = vpop.permute.xlu0 %1702
    %v1705 = vsel %vm32, %v1700, 0
    %v1708 = vsel %vm32, %v1701, 0
    %v1710 = vsel %vm39, %v1703, 0
    %1712 = vmatpush.msra.mxu0 0.0
    %1713 = vmatpush.msra.mxu0 0.0
    %1714 = vmatpush.msra.mxu0 0.0
    %1715 = vmatpush.msra.mxu0 0.0
    %1716 = vmatpush.msra.mxu0 0.0
    %1717 = vmatpush.msra.mxu0 0.0
    %1718 = vmatpush.msra.mxu0 0.0
    %1719 = vmatpush.msra.mxu0 0.0
    %1720 = vmatpush.msra.mxu0 0.0
    %1721 = vmatpush.msra.mxu0 0.0
    %1722 = vmatpush.msra.mxu0 0.0
    %1723 = vmatpush.msra.mxu0 0.0
    %1724 = vmatpush.msra.mxu0 0.0
    %1725 = vmatpush.msra.mxu0 0.0
    %1726 = vmatpush.msra.mxu0 0.0
    %1727 = vmatpush.msra.mxu0 %v1710
    %1728 = vmatmul.f32.gmra.mxu0 %v1705
    %v1729 = vpop.f32.mrf.mxu0
    %v1730 = vadd.f32 0.0, %v1729
    %1731 = vmatmul.f32.gmra.mxu0 %v1708
    %v1732 = vpop.f32.mrf.mxu0
    %v1733 = vadd.f32 0.0, %v1732
    %1734 = vdwg.mxu0
    %v1735 = vadd.f32 %v1698, %v1730
    %v1736 = vadd.f32 %v1699, %v1733
    %v1737 = vld [vmem:[%s476] sm:$0xff]
    %v1738 = vld [vmem:[%s476 + $0x8] sm:$0xff]
    %1739 = vrot.lane.b32.xlu0 %v1297, 116
    %v1740 = vpop.permute.xlu0 %1739
    %v1742 = vsel %vm32, %v1737, 0
    %v1745 = vsel %vm32, %v1738, 0
    %v1747 = vsel %vm39, %v1740, 0
    %1749 = vmatpush.msra.mxu0 0.0
    %1750 = vmatpush.msra.mxu0 0.0
    %1751 = vmatpush.msra.mxu0 0.0
    %1752 = vmatpush.msra.mxu0 0.0
    %1753 = vmatpush.msra.mxu0 0.0
    %1754 = vmatpush.msra.mxu0 0.0
    %1755 = vmatpush.msra.mxu0 0.0
    %1756 = vmatpush.msra.mxu0 0.0
    %1757 = vmatpush.msra.mxu0 0.0
    %1758 = vmatpush.msra.mxu0 0.0
    %1759 = vmatpush.msra.mxu0 0.0
    %1760 = vmatpush.msra.mxu0 0.0
    %1761 = vmatpush.msra.mxu0 0.0
    %1762 = vmatpush.msra.mxu0 0.0
    %1763 = vmatpush.msra.mxu0 0.0
    %1764 = vmatpush.msra.mxu0 %v1747
    %1765 = vmatmul.f32.gmra.mxu0 %v1742
    %v1766 = vpop.f32.mrf.mxu0
    %v1767 = vadd.f32 0.0, %v1766
    %1768 = vmatmul.f32.gmra.mxu0 %v1745
    %v1769 = vpop.f32.mrf.mxu0
    %v1770 = vadd.f32 0.0, %v1769
    %1771 = vdwg.mxu0
    %v1772 = vadd.f32 %v1735, %v1767
    %v1773 = vadd.f32 %v1736, %v1770
    %v1774 = vld [vmem:[%s514] sm:$0xff]
    %v1775 = vld [vmem:[%s514 + $0x8] sm:$0xff]
    %1776 = vrot.lane.b32.xlu0 %v1297, 115
    %v1777 = vpop.permute.xlu0 %1776
    %v1779 = vsel %vm32, %v1774, 0
    %v1782 = vsel %vm32, %v1775, 0
    %v1784 = vsel %vm39, %v1777, 0
    %1786 = vmatpush.msra.mxu0 0.0
    %1787 = vmatpush.msra.mxu0 0.0
    %1788 = vmatpush.msra.mxu0 0.0
    %1789 = vmatpush.msra.mxu0 0.0
    %1790 = vmatpush.msra.mxu0 0.0
    %1791 = vmatpush.msra.mxu0 0.0
    %1792 = vmatpush.msra.mxu0 0.0
    %1793 = vmatpush.msra.mxu0 0.0
    %1794 = vmatpush.msra.mxu0 0.0
    %1795 = vmatpush.msra.mxu0 0.0
    %1796 = vmatpush.msra.mxu0 0.0
    %1797 = vmatpush.msra.mxu0 0.0
    %1798 = vmatpush.msra.mxu0 0.0
    %1799 = vmatpush.msra.mxu0 0.0
    %1800 = vmatpush.msra.mxu0 0.0
    %1801 = vmatpush.msra.mxu0 %v1784
    %1802 = vmatmul.f32.gmra.mxu0 %v1779
    %v1803 = vpop.f32.mrf.mxu0
    %v1804 = vadd.f32 0.0, %v1803
    %1805 = vmatmul.f32.gmra.mxu0 %v1782
    %v1806 = vpop.f32.mrf.mxu0
    %v1807 = vadd.f32 0.0, %v1806
    %1808 = vdwg.mxu0
    %v1809 = vadd.f32 %v1772, %v1804
    %v1810 = vadd.f32 %v1773, %v1807
    %v1811 = vld [vmem:[%s552] sm:$0xff]
    %v1812 = vld [vmem:[%s552 + $0x8] sm:$0xff]
    %1813 = vrot.lane.b32.xlu0 %v1297, 114
    %v1814 = vpop.permute.xlu0 %1813
    %v1816 = vsel %vm32, %v1811, 0
    %v1819 = vsel %vm32, %v1812, 0
    %v1821 = vsel %vm39, %v1814, 0
    %1823 = vmatpush.msra.mxu0 0.0
    %1824 = vmatpush.msra.mxu0 0.0
    %1825 = vmatpush.msra.mxu0 0.0
    %1826 = vmatpush.msra.mxu0 0.0
    %1827 = vmatpush.msra.mxu0 0.0
    %1828 = vmatpush.msra.mxu0 0.0
    %1829 = vmatpush.msra.mxu0 0.0
    %1830 = vmatpush.msra.mxu0 0.0
    %1831 = vmatpush.msra.mxu0 0.0
    %1832 = vmatpush.msra.mxu0 0.0
    %1833 = vmatpush.msra.mxu0 0.0
    %1834 = vmatpush.msra.mxu0 0.0
    %1835 = vmatpush.msra.mxu0 0.0
    %1836 = vmatpush.msra.mxu0 0.0
    %1837 = vmatpush.msra.mxu0 0.0
    %1838 = vmatpush.msra.mxu0 %v1821
    %1839 = vmatmul.f32.gmra.mxu0 %v1816
    %v1840 = vpop.f32.mrf.mxu0
    %v1841 = vadd.f32 0.0, %v1840
    %1842 = vmatmul.f32.gmra.mxu0 %v1819
    %v1843 = vpop.f32.mrf.mxu0
    %v1844 = vadd.f32 0.0, %v1843
    %1845 = vdwg.mxu0
    %v1846 = vadd.f32 %v1809, %v1841
    %v1847 = vadd.f32 %v1810, %v1844
    %v1848 = vld [vmem:[%s590] sm:$0xff]
    %v1849 = vld [vmem:[%s590 + $0x8] sm:$0xff]
    %1850 = vrot.lane.b32.xlu0 %v1297, 113
    %v1851 = vpop.permute.xlu0 %1850
    %v1853 = vsel %vm32, %v1848, 0
    %v1856 = vsel %vm32, %v1849, 0
    %v1858 = vsel %vm39, %v1851, 0
    %1860 = vmatpush.msra.mxu0 0.0
    %1861 = vmatpush.msra.mxu0 0.0
    %1862 = vmatpush.msra.mxu0 0.0
    %1863 = vmatpush.msra.mxu0 0.0
    %1864 = vmatpush.msra.mxu0 0.0
    %1865 = vmatpush.msra.mxu0 0.0
    %1866 = vmatpush.msra.mxu0 0.0
    %1867 = vmatpush.msra.mxu0 0.0
    %1868 = vmatpush.msra.mxu0 0.0
    %1869 = vmatpush.msra.mxu0 0.0
    %1870 = vmatpush.msra.mxu0 0.0
    %1871 = vmatpush.msra.mxu0 0.0
    %1872 = vmatpush.msra.mxu0 0.0
    %1873 = vmatpush.msra.mxu0 0.0
    %1874 = vmatpush.msra.mxu0 0.0
    %1875 = vmatpush.msra.mxu0 %v1858
    %1876 = vmatmul.f32.gmra.mxu0 %v1853
    %v1877 = vpop.f32.mrf.mxu0
    %v1878 = vadd.f32 0.0, %v1877
    %1879 = vmatmul.f32.gmra.mxu0 %v1856
    %v1880 = vpop.f32.mrf.mxu0
    %v1881 = vadd.f32 0.0, %v1880
    %1882 = vdwg.mxu0
    %v1883 = vadd.f32 %v1846, %v1878
    %v1884 = vadd.f32 %v1847, %v1881
    %v1885 = vadd.f32 %v1883, %v631
    %v1886 = vadd.f32 %v1884, %v636
    %vm1887 = vcmp.gt.f32.partialorder %v1885, 0.0
    %vm1888 = vcmp.gt.f32.partialorder %v1886, 0.0
    %v1889 = vmul.f32 %v1885, 1.442695
    %v1890 = vpow.pop %v1889
    %v1891 = vmul.f32 %v1886, 1.442695
    %v1892 = vpow.pop %v1891
    %v1893 = vsub.f32 %v1890, 1.0
    %v1894 = vsub.f32 %v1892, 1.0
    %v1895 = vmul.f32 %v1893, 1.6732632
    %v1896 = vmul.f32 %v1894, 1.6732632
    %v1897 = vsel %vm1887, %v1885, %v1895
    %v1898 = vsel %vm1888, %v1886, %v1896
    %v1899 = vmul.f32 %v1897, 1.050701
    %v1900 = vmul.f32 %v1898, 1.050701
    %1901 = vst.msk [vmem:[#allocation6] sm:$0xff] %vm654, %v1899
    %1902 = vst.msk [vmem:[#allocation6 + $0x8] sm:$0xff] %vm654, %v1900
    %v1904 = vsel %vm654, %v1899, 0
    %v1907 = vsel %vm654, %v1900, 0
    %1909 = vmatpush.xpose.msra.mxu0 0.0
    %1910 = vmatpush.xpose.msra.mxu0 0.0
    %1911 = vmatpush.xpose.msra.mxu0 0.0
    %1912 = vmatpush.xpose.msra.mxu0 0.0
    %1913 = vmatpush.xpose.msra.mxu0 0.0
    %1914 = vmatpush.xpose.msra.mxu0 0.0
    %1915 = vmatpush.xpose.msra.mxu0 0.0
    %1916 = vmatpush.xpose.msra.mxu0 0.0
    %1917 = vmatpush.xpose.msra.mxu0 0.0
    %1918 = vmatpush.xpose.msra.mxu0 0.0
    %1919 = vmatpush.xpose.msra.mxu0 0.0
    %1920 = vmatpush.xpose.msra.mxu0 0.0
    %1921 = vmatpush.xpose.msra.mxu0 0.0
    %1922 = vmatpush.xpose.msra.mxu0 0.0
    %1923 = vmatpush.xpose.msra.mxu0 %v1907
    %1924 = vmatpush.xpose.msra.mxu0 %v1904
    %1925 = vmatmul.f32.gmra.mxu0 %v1904
    %v1926 = vpop.f32.mrf.mxu0
    %v1927 = vadd.f32 0.0, %v1926
    %1928 = vmatmul.f32.gmra.mxu0 %v1907
    %v1929 = vpop.f32.mrf.mxu0
    %v1930 = vadd.f32 0.0, %v1929
    %1931 = vdwg.mxu0
    %v1932 = vmul.f32 %v1927, 0.0625
    %v1933 = vmul.f32 %v1930, 0.0625
    %1934 = vst.msk [vmem:[#allocation7] sm:$0xff] %vm1293, %v1932
    %1935 = vst.msk [vmem:[#allocation7 + $0x8] sm:$0xff] %vm1293, %v1933
    // Predicated region
    $region14: #{neural_network_forward.1} parent=1 // pred_check
      _
    $region15: #{neural_network_forward.1} parent=1 // pred_check_branch
      %1937 = sbr.rel (0) target = $region17
    $region16: #{neural_network_forward.1} parent=1 // pred_region
      %1939 = vsyncadd [#allocation3], 0
      %s1940 = sshll.u32 [#allocation2], 4
      %s1941 = int_to_ptr.vmem [resolvable:$true] %s1940
      %s1942 = sshll.u32 %s3, 4
      %s1943 = int_to_ptr.hbm [resolvable:$true] %s1942
      %1948 = dma.vmem_to_hbm [thread:$0]  %s1941, 256, %s1943, [#allocation3], 128, 128, 8
    $region17: #{neural_network_forward.1} parent=1 // pred_fallthru
      _
    // Predicated region
    $region18: #{neural_network_forward.1} parent=1 // pred_check
      _
    $region19: #{neural_network_forward.1} parent=1 // pred_check_branch
      %1950 = sbr.rel (0) target = $region21
    $region20: #{neural_network_forward.1} parent=1 // pred_region
      %1952 = vsyncadd [#allocation5], 0
      %s1953 = sshll.u32 [#allocation4], 4
      %s1954 = int_to_ptr.vmem [resolvable:$true] %s1953
      %s1955 = sshll.u32 %s4, 4
      %s1956 = int_to_ptr.hbm [resolvable:$true] %s1955
      %1961 = dma.vmem_to_hbm [thread:$0]  %s1954, 256, %s1956, [#allocation5], 128, 128, 8
    $region21: #{neural_network_forward.1} parent=1 // pred_fallthru
      _
    // Predicated region
    $region22: #{neural_network_forward.1} parent=1 // pred_check
      _
    $region23: #{neural_network_forward.1} parent=1 // pred_check_branch
      %1963 = sbr.rel (0) target = $region25
    $region24: #{neural_network_forward.1} parent=1 // pred_region
      %1965 = vsyncadd [#allocation5], 0
      %s1966 = sshll.u32 [#allocation6], 4
      %s1967 = int_to_ptr.vmem [resolvable:$true] %s1966
      %s1968 = sshll.u32 %s5, 4
      %s1969 = int_to_ptr.hbm [resolvable:$true] %s1968
      %1974 = dma.vmem_to_hbm [thread:$0]  %s1967, 256, %s1969, [#allocation5], 128, 128, 8
    $region25: #{neural_network_forward.1} parent=1 // pred_fallthru
      _
    // Predicated region
    $region26: #{neural_network_forward.1} parent=1 // pred_check
      _
    $region27: #{neural_network_forward.1} parent=1 // pred_check_branch
      %1976 = sbr.rel (0) target = $region29
    $region28: #{neural_network_forward.1} parent=1 // pred_region
      %1978 = vsyncadd [#allocation8], 0
      %s1979 = sshll.u32 [#allocation7], 4
      %s1980 = int_to_ptr.vmem [resolvable:$true] %s1979
      %s1981 = sshll.u32 %s6, 4
      %s1982 = int_to_ptr.hbm [resolvable:$true] %s1981
      %1987 = dma.vmem_to_hbm [thread:$0]  %s1980, 256, %s1982, [#allocation8], 128, 128, 8
    $region29: #{neural_network_forward.1} parent=1 // pred_fallthru
      _
    // Predicated region
    $region30: #{neural_network_forward.1} parent=1 // pred_check
      _
    $region31: #{neural_network_forward.1} parent=1 // pred_check_branch
      %1989 = sbr.rel (0) target = $region33
    $region32: #{neural_network_forward.1} parent=1 // pred_region
      %1991 = dma.done [#allocation3], 256
    $region33: #{neural_network_forward.1} parent=1 // pred_fallthru
      _
    // Predicated region
    $region34: #{neural_network_forward.1} parent=1 // pred_check
      _
    $region35: #{neural_network_forward.1} parent=1 // pred_check_branch
      %1993 = sbr.rel (0) target = $region37
    $region36: #{neural_network_forward.1} parent=1 // pred_region
      %1995 = dma.done [#allocation5], 256
    $region37: #{neural_network_forward.1} parent=1 // pred_fallthru
      _
    // Predicated region
    $region38: #{neural_network_forward.1} parent=1 // pred_check
      _
    $region39: #{neural_network_forward.1} parent=1 // pred_check_branch
      %1997 = sbr.rel (0) target = $region41
    $region40: #{neural_network_forward.1} parent=1 // pred_region
      %1999 = dma.done [#allocation5], 256
    $region41: #{neural_network_forward.1} parent=1 // pred_fallthru
      _
    // Predicated region
    $region42: #{neural_network_forward.1} parent=1 // pred_check
      _
    $region43: #{neural_network_forward.1} parent=1 // pred_check_branch
      %2001 = sbr.rel (0) target = $region45
    $region44: #{neural_network_forward.1} parent=1 // pred_region
      %2003 = dma.done [#allocation8], 256
    $region45: #{neural_network_forward.1} parent=1 // pred_fallthru
      _
    %2004 = vsyncpa [#allocation3], 1
    %2005 = vsyncpa [#allocation5], 1
    %2006 = vsyncpa [#allocation8], 1

</llo_original>
